<compile_context>
chip_gen: v5e
topology: v5e:2x2
jax: 0.10.0
libtpu: 0.0.40
codegen_flags: <defaults>
</compile_context>

<pallas_src>
import math
import functools

import jax
import jax.numpy as jnp
from jax.experimental import pallas as pl
from jax.experimental.pallas import tpu as pltpu


NEG_MASK = -1.0e12   # torch: att_scores += bernoulli(dropout) * -1e12
LN_EPS = 1e-5


# --------------------------------------------------------------------------- #
# shared math helpers (used by both the kernel and the pure-JAX reference)
# --------------------------------------------------------------------------- #
def _gelu_erf(x):
    # torch.nn.GELU() default (exact erf form)
    return 0.5 * x * (1.0 + jax.lax.erf(x * (1.0 / math.sqrt(2.0))))


def conv1d_as_matrix(w, n):
    """Conv1d(1->1 ch, stride 1, pad (k-1)//2, no bias) over a length-n axis as
    an (n, n) banded matrix C such that conv(x) == x @ C (cross-correlation)."""
    k = w.shape[0]
    p = (k - 1) // 2
    i = jnp.arange(n)[:, None]          # input position
    j = jnp.arange(n)[None, :]          # output position
    u = i - j + p                       # filter tap mapping x[i] -> y[j]
    valid = (u >= 0) & (u < k)
    return jnp.where(valid, w[jnp.clip(u, 0, k - 1)], 0.0).astype(w.dtype)


# --------------------------------------------------------------------------- #
# Pallas kernel: one full decoder-block step per grid point
# --------------------------------------------------------------------------- #
def _decoder_step_kernel(
    x_ref, mask_ref,
    conv1_ref, conv2_ref,
    wq_ctx_ref, fc_ctx_ref,
    wq_glb_ref, fc_glb_ref, kf_glb_ref, vf_glb_ref,
    wq_crs_ref, fc_crs_ref,
    ln_ref, w1_ref, b1_ref, w2_ref, b2_ref,
    y_ref, h_ref,
    *, n_heads, d_qk, d_v):
    f32 = jnp.float32
    inv_sqrt_dq = 1.0 / math.sqrt(d_qk)

    def layer_norm(i, v):
        g = ln_ref[2 * i:2 * i + 1, :]
        b = ln_ref[2 * i + 1:2 * i + 2, :]
        mu = jnp.mean(v, axis=-1, keepdims=True)
        var = jnp.mean(jnp.square(v - mu), axis=-1, keepdims=True)
        return (v - mu) * jax.lax.rsqrt(var + LN_EPS) * g + b

    def attn_single_key(kv, wq, fc):
        # Multi_Head_CrossAttention with key length 1: softmax over one key is
        # exactly 1.0, so the output is fc(W_Q(kv)) (V uses W_Q in the module),
        # independent of the query, of W_K and of the bernoulli score mask.
        vf = jnp.dot(kv, wq, preferred_element_type=f32)
        return jnp.dot(vf, fc, preferred_element_type=f32)

    def attn_global(q_in):
        # Q: this step's row; K/V: hoisted projections of the full decoder input.
        qf = jnp.dot(q_in, wq_glb_ref[...], preferred_element_type=f32)   # (bs, H*dq)
        kf = kf_glb_ref[...]                                              # (bs, S, H*dk)
        vf = vf_glb_ref[...]                                              # (bs, S, H*dv)
        msk = mask_ref[...]                                               # (1, H, bs, S)
        out = jnp.zeros((q_in.shape[0], fc_glb_ref.shape[1]), dtype=f32)
        for h in range(n_heads):                                          # static unroll
            sq = slice(h * d_qk, (h + 1) * d_qk)
            sv = slice(h * d_v, (h + 1) * d_v)
            q_h = qf[:, sq]                                               # (bs, dq)
            s_h = jnp.sum(q_h[:, None, :] * kf[:, :, sq], axis=-1) * inv_sqrt_dq
            s_h = s_h + msk[0, h] * NEG_MASK                              # (bs, S)
            s_h = s_h - jnp.max(s_h, axis=-1, keepdims=True)
            e_h = jnp.exp(s_h)
            p_h = e_h / jnp.sum(e_h, axis=-1, keepdims=True)
            o_h = jnp.sum(p_h[:, :, None] * vf[:, :, sv], axis=1)         # (bs, dv)
            out = out + jnp.dot(o_h, fc_glb_ref[sv, :], preferred_element_type=f32)
        return out

    x_t = x_ref[0].astype(f32)                                            # (bs, d_model)

    # conv1 -> context attention -> ln1
    res = x_t
    xc = jnp.dot(x_t, conv1_ref[...], preferred_element_type=f32)
    x1 = layer_norm(0, attn_single_key(xc, wq_ctx_ref[...], fc_ctx_ref[...]) + res)

    # conv2 -> global attention (keys/values = decoder input) -> ln2
    res = x1
    xg = jnp.dot(x1, conv2_ref[...], preferred_element_type=f32)
    x2 = layer_norm(1, attn_global(xg) + res)

    # cross attention -> ln3   (h is also the recurrent hn output)
    res = x2
    h = attn_single_key(x2, wq_crs_ref[...], fc_crs_ref[...])
    x3 = layer_norm(2, h + res)

    # MLP (Linear -> GELU -> Linear) -> ln4
    res = x3
    y = jnp.dot(x3, w1_ref[...], preferred_element_type=f32) + b1_ref[...]
    y = _gelu_erf(y)
    y = jnp.dot(y, w2_ref[...], preferred_element_type=f32) + b2_ref[...]
    y = layer_norm(3, y + res)

    y_ref[0] = y.astype(y_ref.dtype)
    h_ref[0] = h.astype(h_ref.dtype)


@functools.partial(jax.jit, static_argnames=("n_heads", "d_qk", "d_v"))
def _decoder_steps(x_seq, score_mask, conv1_m, conv2_m,
                   wq_ctx, fc_ctx, wq_glb, fc_glb, kf_glb, vf_glb,
                   wq_crs, fc_crs, ln_params, w1, b1, w2, b2,
                   *, n_heads, d_qk, d_v):
    T, bs, d_model = x_seq.shape
    S = kf_glb.shape[1]
    d_att = wq_ctx.shape[1]
    d_ff = w1.shape[1]
    dtype = x_seq.dtype

    kernel = functools.partial(_decoder_step_kernel,
                               n_heads=n_heads, d_qk=d_qk, d_v=d_v)

    step3 = lambda t: (t, 0, 0)
    step4 = lambda t: (t, 0, 0, 0)
    const2 = lambda t: (0, 0)
    const3 = lambda t: (0, 0, 0)

    grid_spec = pltpu.PrefetchScalarGridSpec(
        num_scalar_prefetch=0,
        grid=(T,),
        in_specs=[
            pl.BlockSpec((1, bs, d_model), step3),          # x_seq, one step per grid point
            pl.BlockSpec((1, n_heads, bs, S), step4),       # bernoulli score mask (global attn)
            pl.BlockSpec((d_model, d_model), const2),       # conv1 as banded matrix
            pl.BlockSpec((d_model, d_model), const2),       # conv2 as banded matrix
            pl.BlockSpec((d_model, d_att), const2),         # context W_Q^T
            pl.BlockSpec((d_att, d_model), const2),         # context fc^T
            pl.BlockSpec((d_model, d_att), const2),         # global  W_Q^T
            pl.BlockSpec((d_att, d_model), const2),         # global  fc^T
            pl.BlockSpec((bs, S, d_att), const3),           # global  K = input @ W_K^T (hoisted)
            pl.BlockSpec((bs, S, d_att), const3),           # global  V = input @ W_Q^T (hoisted)
            pl.BlockSpec((d_model, d_att), const2),         # cross   W_Q^T
            pl.BlockSpec((d_att, d_model), const2),         # cross   fc^T
            pl.BlockSpec((8, d_model), const2),             # ln1..ln4 (gamma, beta) rows
            pl.BlockSpec((d_model, d_ff), const2),          # mlp W1^T
            pl.BlockSpec((1, d_ff), const2),                # mlp b1
            pl.BlockSpec((d_ff, d_model), const2),          # mlp W2^T
            pl.BlockSpec((1, d_model), const2),             # mlp b2
        ],
        out_specs=[
            pl.BlockSpec((1, bs, d_model), step3),          # y per step
            pl.BlockSpec((1, bs, d_model), step3),          # h per step (hn stream)
        ],
    )

    itemsize = jnp.dtype(dtype).itemsize
    weight_bytes = sum(a.size for a in (conv1_m, conv2_m, wq_ctx, fc_ctx, wq_glb, fc_glb,
                                        kf_glb, vf_glb, wq_crs, fc_crs, ln_params,
                                        w1, b1, w2, b2)) * itemsize
    cost = pl.CostEstimate(
        flops=2 * T * bs * (d_model * (2 * d_model + 3 * d_att + 2 * d_ff)
                            + 3 * d_att * d_model
                            + 2 * n_heads * S * d_qk),
        transcendentals=T * bs * (d_ff + n_heads * S),
        bytes_accessed=weight_bytes + itemsize * (x_seq.size + score_mask.size
                                                  + 2 * T * bs * d_model),
    )

    y_seq, h_seq = pl.pallas_call(
        kernel,
        out_shape=(jax.ShapeDtypeStruct((T, bs, d_model), dtype),
                   jax.ShapeDtypeStruct((T, bs, d_model), dtype)),
        grid_spec=grid_spec,
        compiler_params=pltpu.CompilerParams(
            dimension_semantics=("parallel",),   # decode steps are provably independent
            vmem_limit_bytes=64 * 1024 * 1024,
        ),
        cost_estimate=cost,
    )(x_seq, score_mask, conv1_m, conv2_m, wq_ctx, fc_ctx, wq_glb, fc_glb,
      kf_glb, vf_glb, wq_crs, fc_crs, ln_params, w1, b1, w2, b2)
    return y_seq, h_seq


# --------------------------------------------------------------------------- #
# module-level wrapper: Translator_Decoder_Block.forward
# --------------------------------------------------------------------------- #
def translator_decoder_block(inputs, params, score_mask):
    """inputs = (x, encoder_output, hn); returns (output, encoder_output, hn)."""
    x, encoder_output, h0 = inputs
    bs, S, d_model = x.shape
    n_heads, d_qk, d_v = params["n_heads"], params["d_qk"], params["d_v"]

    # x_seq[t] = torch.cat((h0, input), dim=1)[:, t, :]
    x_seq = jnp.transpose(jnp.concatenate([h0, x], axis=1), (1, 0, 2))   # (T, bs, d_model)

    conv1_m = conv1d_as_matrix(params["conv1_w"], d_model)
    conv2_m = conv1d_as_matrix(params["conv2_w"], d_model)

    # Global attention K/V are projections of the (time-invariant) decoder input.
    # NOTE: the V projection uses W_Q, faithfully reproducing the reference module.
    kf_glb = jnp.einsum("bsm,fm->bsf", x, params["glb_wk"])
    vf_glb = jnp.einsum("bsm,fm->bsf", x, params["glb_wq"])

    ln_params = jnp.stack([params["ln1_g"], params["ln1_b"],
                           params["ln2_g"], params["ln2_b"],
                           params["ln3_g"], params["ln3_b"],
                           params["ln4_g"], params["ln4_b"]], axis=0)

    y_seq, h_seq = _decoder_steps(
        x_seq, score_mask, conv1_m, conv2_m,
        params["ctx_wq"].T, params["ctx_fc"].T,
        params["glb_wq"].T, params["glb_fc"].T, kf_glb, vf_glb,
        params["crs_wq"].T, params["crs_fc"].T,
        ln_params,
        params["mlp_w1"].T, params["mlp_b1"].reshape(1, -1),
        params["mlp_w2"].T, params["mlp_b2"].reshape(1, -1),
        n_heads=n_heads, d_qk=d_qk, d_v=d_v)

    # TLdecoder: output = cat(ones, y_0..y_{T-1})[:, 2:]  ->  y_1..y_{T-1};  hn = last h
    output = jnp.transpose(y_seq[1:], (1, 0, 2))       # (bs, S, d_model)
    hn = h_seq[-1][:, None, :]                          # (bs, 1, d_model)
    return output, encoder_output, hn


# --------------------------------------------------------------------------- #
# literal pure-JAX reference (transcription of the PyTorch module)
# --------------------------------------------------------------------------- #
def _conv1d_ref(x, w):
    k = w.shape[0]
    p = (k - 1) // 2
    xp = jnp.pad(x, [(0, 0)] * (x.ndim - 1) + [(p, p)])
    n = x.shape[-1]
    return sum(w[u] * xp[..., u:u + n] for u in range(k))


def _layer_norm_ref(x, g, b):
    mu = jnp.mean(x, axis=-1, keepdims=True)
    var = jnp.mean(jnp.square(x - mu), axis=-1, keepdims=True)
    return (x - mu) / jnp.sqrt(var + LN_EPS) * g + b


def _mha_ref(q_in, k_in, v_in, wq, wk, fc, mask, n_heads, d_qk, d_v):
    bs = q_in.shape[0]
    Q = jnp.transpose((q_in @ wq.T).reshape(bs, -1, n_heads, d_qk), (0, 2, 1, 3))
    K = jnp.transpose((k_in @ wk.T).reshape(bs, -1, n_heads, d_qk), (0, 2, 1, 3))
    V = jnp.transpose((v_in @ wq.T).reshape(bs, -1, n_heads, d_v), (0, 2, 1, 3))  # W_Q bug kept
    s = jnp.einsum("bhqd,bhkd->bhqk", Q, K) / math.sqrt(d_qk)
    s = s + mask * NEG_MASK
    p = jax.nn.softmax(s, axis=-1)
    o = jnp.einsum("bhqk,bhkd->bhqd", p, V)
    o = jnp.transpose(o, (0, 2, 1, 3)).reshape(bs, -1, n_heads * d_v)
    return o @ fc.T


def translator_decoder_block_reference(inputs, params, score_mask):
    x, encoder_output, h0 = inputs
    bs, S, d_model = x.shape
    H, dqk, dv = params["n_heads"], params["d_qk"], params["d_v"]
    T = S + 1
    x_seq = jnp.concatenate([h0, x], axis=1)
    enc_seq = jnp.concatenate([h0, encoder_output], axis=1)
    hn = h0
    ys = []
    # Score masks of the key-length-1 attentions cannot change the output
    # (softmax over one key is 1), so zeros is a valid bernoulli realization here.
    mask1 = jnp.zeros((bs, H, 1, 1), x.dtype)
    for t in range(T):
        xt = x_seq[:, t:t + 1, :]
        et = enc_seq[:, t:t + 1, :]
        res = xt
        xc = _conv1d_ref(xt, params["conv1_w"])
        x_context = _mha_ref(hn, xc, xc, params["ctx_wq"], params["ctx_wk"],
                             params["ctx_fc"], mask1, H, dqk, dv)
        xt = _layer_norm_ref(x_context + res, params["ln1_g"], params["ln1_b"])
        res = xt
        xg = _conv1d_ref(xt, params["conv2_w"])
        m_t = jnp.transpose(score_mask[t], (1, 0, 2))[:, :, None, :]     # (bs, H, 1, S)
        x_glob = _mha_ref(xg, x, x, params["glb_wq"], params["glb_wk"],
                          params["glb_fc"], m_t, H, dqk, dv)
        xt = _layer_norm_ref(x_glob + res, params["ln2_g"], params["ln2_b"])
        res = xt
        h = _mha_ref(et, xt, xt, params["crs_wq"], params["crs_wk"],
                     params["crs_fc"], mask1, H, dqk, dv)
        xt = _layer_norm_ref(h + res, params["ln3_g"], params["ln3_b"])
        res = xt
        y = _gelu_erf(xt @ params["mlp_w1"].T + params["mlp_b1"])
        y = y @ params["mlp_w2"].T + params["mlp_b2"]
        y = _layer_norm_ref(y + res, params["ln4_g"], params["ln4_b"])
        ys.append(y)
        hn = h
    output = jnp.concatenate(ys, axis=1)[:, 1:, :]   # == torch cat(ones, y_*)[:, 2:]
    return output, encoder_output, hn


# --------------------------------------------------------------------------- #
# parameter init (torch-style (out, in) weight layout)
# --------------------------------------------------------------------------- #
def init_params(key, d_model, d_qk, d_v, n_heads, d_ff, kernel_size, dtype=jnp.float32):
    assert d_qk == d_v, "the module's V-projection-uses-W_Q quirk requires d_qk == d_v"
    ks = list(jax.random.split(key, 16))

    def lin(k, out_f, in_f):
        lim = 1.0 / math.sqrt(in_f)
        return jax.random.uniform(k, (out_f, in_f), dtype, -lim, lim)

    def bias(k, n, in_f):
        lim = 1.0 / math.sqrt(in_f)
        return jax.random.uniform(k, (n,), dtype, -lim, lim)

    d_att = n_heads * d_qk
    p = {
        "n_heads": n_heads, "d_qk": d_qk, "d_v": d_v,
        "conv1_w": jax.random.normal(ks[0], (kernel_size,), dtype) / kernel_size,
        "conv2_w": jax.random.normal(ks[1], (kernel_size,), dtype) / kernel_size,
        "ctx_wq": lin(ks[2], d_att, d_model), "ctx_wk": lin(ks[3], d_att, d_model),
        "ctx_fc": lin(ks[4], d_model, n_heads * d_v),
        "glb_wq": lin(ks[5], d_att, d_model), "glb_wk": lin(ks[6], d_att, d_model),
        "glb_fc": lin(ks[7], d_model, n_heads * d_v),
        "crs_wq": lin(ks[8], d_att, d_model), "crs_wk": lin(ks[9], d_att, d_model),
        "crs_fc": lin(ks[10], d_model, n_heads * d_v),
        "mlp_w1": lin(ks[11], d_ff, d_model), "mlp_b1": bias(ks[12], d_ff, d_model),
        "mlp_w2": lin(ks[13], d_model, d_ff), "mlp_b2": bias(ks[14], d_model, d_ff),
    }
    ln_keys = jax.random.split(ks[15], 8)
    for i, name in enumerate(("ln1", "ln2", "ln3", "ln4")):
        p[name + "_g"] = 1.0 + 0.05 * jax.random.normal(ln_keys[2 * i], (d_model,), dtype)
        p[name + "_b"] = 0.05 * jax.random.normal(ln_keys[2 * i + 1], (d_model,), dtype)
    return p


if __name__ == "__main__":
    key = jax.random.PRNGKey(0)
    k_par, k_x, k_enc, k_h0, k_msk = jax.random.split(key, 5)

    bs, S = 2, 8
    d_model, d_ff = 128, 256
    n_heads, d_qk, d_v = 4, 32, 32
    kernel_size = 3
    dropout = 0.15

    params = init_params(k_par, d_model, d_qk, d_v, n_heads, d_ff, kernel_size)

    x = jax.random.normal(k_x, (bs, S, d_model), jnp.float32)
    encoder_output = jax.random.normal(k_enc, (bs, S, d_model), jnp.float32)
    h0 = jax.random.normal(k_h0, (bs, 1, d_model), jnp.float32)

    # torch.bernoulli(dropout) score mask of the global attention, one draw per step.
    T = S + 1
    score_mask = jax.random.bernoulli(
        k_msk, dropout, (T, n_heads, bs, S)).astype(jnp.float32)

    out, enc_out, hn = translator_decoder_block((x, encoder_output, h0), params, score_mask)
    out = jax.block_until_ready(out)
    hn = jax.block_until_ready(hn)

    assert out.shape == (bs, S, d_model)
    assert hn.shape == (bs, 1, d_model)
    assert enc_out.shape == encoder_output.shape

    ref_out, _, ref_hn = translator_decoder_block_reference(
        (x, encoder_output, h0), params, score_mask)
    err_y = float(jnp.max(jnp.abs(out - ref_out)))
    err_h = float(jnp.max(jnp.abs(hn - ref_hn)))
    assert err_y < 2e-3 and err_h < 2e-3, f"mismatch vs reference: y={err_y}, h={err_h}"

    print("KERNEL_OK")
</pallas_src>

<mosaic_0001>
module attributes {stable_mosaic.version = 11 : i64} {
  func.func @_decoder_step_kernel(%arg0: i32, %arg1: memref<1x2x128xf32, #tpu.memory_space<vmem>>, %arg2: memref<1x4x2x8xf32, #tpu.memory_space<vmem>>, %arg3: memref<128x128xf32, #tpu.memory_space<vmem>>, %arg4: memref<128x128xf32, #tpu.memory_space<vmem>>, %arg5: memref<128x128xf32, #tpu.memory_space<vmem>>, %arg6: memref<128x128xf32, #tpu.memory_space<vmem>>, %arg7: memref<128x128xf32, #tpu.memory_space<vmem>>, %arg8: memref<128x128xf32, #tpu.memory_space<vmem>>, %arg9: memref<2x8x128xf32, #tpu.memory_space<vmem>>, %arg10: memref<2x8x128xf32, #tpu.memory_space<vmem>>, %arg11: memref<128x128xf32, #tpu.memory_space<vmem>>, %arg12: memref<128x128xf32, #tpu.memory_space<vmem>>, %arg13: memref<8x128xf32, #tpu.memory_space<vmem>>, %arg14: memref<128x256xf32, #tpu.memory_space<vmem>>, %arg15: memref<1x256xf32, #tpu.memory_space<vmem>>, %arg16: memref<256x128xf32, #tpu.memory_space<vmem>>, %arg17: memref<1x128xf32, #tpu.memory_space<vmem>>, %arg18: memref<1x2x128xf32, #tpu.memory_space<vmem>>, %arg19: memref<1x2x128xf32, #tpu.memory_space<vmem>>) attributes {dimension_semantics = [#tpu.dimension_semantics<parallel>], iteration_bounds = array<i64: 9>, scalar_prefetch = 0 : i64, scratch_operands = 0 : i64, tpu.core_type = #tpu.core_type<tc>, window_params = [{transform_indices = @transform_0, window_bounds = array<i64: 1, 2, 128>}, {transform_indices = @transform_1, window_bounds = array<i64: 1, 4, 2, 8>}, {pipeline_mode = #tpu.pipeline_mode<synchronous>, transform_indices = @transform_2, window_bounds = array<i64: 128, 128>}, {pipeline_mode = #tpu.pipeline_mode<synchronous>, transform_indices = @transform_3, window_bounds = array<i64: 128, 128>}, {pipeline_mode = #tpu.pipeline_mode<synchronous>, transform_indices = @transform_4, window_bounds = array<i64: 128, 128>}, {pipeline_mode = #tpu.pipeline_mode<synchronous>, transform_indices = @transform_5, window_bounds = array<i64: 128, 128>}, {pipeline_mode = #tpu.pipeline_mode<synchronous>, transform_indices = @transform_6, window_bounds = array<i64: 128, 128>}, {pipeline_mode = #tpu.pipeline_mode<synchronous>, transform_indices = @transform_7, window_bounds = array<i64: 128, 128>}, {pipeline_mode = #tpu.pipeline_mode<synchronous>, transform_indices = @transform_8, window_bounds = array<i64: 2, 8, 128>}, {pipeline_mode = #tpu.pipeline_mode<synchronous>, transform_indices = @transform_9, window_bounds = array<i64: 2, 8, 128>}, {pipeline_mode = #tpu.pipeline_mode<synchronous>, transform_indices = @transform_10, window_bounds = array<i64: 128, 128>}, {pipeline_mode = #tpu.pipeline_mode<synchronous>, transform_indices = @transform_11, window_bounds = array<i64: 128, 128>}, {pipeline_mode = #tpu.pipeline_mode<synchronous>, transform_indices = @transform_12, window_bounds = array<i64: 8, 128>}, {pipeline_mode = #tpu.pipeline_mode<synchronous>, transform_indices = @transform_13, window_bounds = array<i64: 128, 256>}, {pipeline_mode = #tpu.pipeline_mode<synchronous>, transform_indices = @transform_14, window_bounds = array<i64: 1, 256>}, {pipeline_mode = #tpu.pipeline_mode<synchronous>, transform_indices = @transform_15, window_bounds = array<i64: 256, 128>}, {pipeline_mode = #tpu.pipeline_mode<synchronous>, transform_indices = @transform_16, window_bounds = array<i64: 1, 128>}, {transform_indices = @transform_17, window_bounds = array<i64: 1, 2, 128>}, {transform_indices = @transform_18, window_bounds = array<i64: 1, 2, 128>}]} {
    %c0 = arith.constant 0 : index
    %c0_0 = arith.constant 0 : index
    %c0_1 = arith.constant 0 : index
    %0 = vector.load %arg1[%c0, %c0_0, %c0_1] : memref<1x2x128xf32, #tpu.memory_space<vmem>>, vector<1x2x128xf32>
    %1 = vector.shape_cast %0 : vector<1x2x128xf32> to vector<2x128xf32>
    %c0_2 = arith.constant 0 : index
    %c0_3 = arith.constant 0 : index
    %2 = vector.load %arg3[%c0_2, %c0_3] : memref<128x128xf32, #tpu.memory_space<vmem>>, vector<128x128xf32>
    %cst = arith.constant dense<0.000000e+00> : vector<2x128xf32>
    %3 = tpu.matmul %1, %2, %cst {dimension_numbers = #tpu.dot_dimension_numbers<[1], [0], [0], [1], [0, 0, 1, 1], [], []>} : vector<2x128xf32>, vector<128x128xf32>, vector<2x128xf32> -> vector<2x128xf32>
    %c0_4 = arith.constant 0 : index
    %c0_5 = arith.constant 0 : index
    %4 = vector.load %arg5[%c0_4, %c0_5] : memref<128x128xf32, #tpu.memory_space<vmem>>, vector<128x128xf32>
    %c0_6 = arith.constant 0 : index
    %c0_7 = arith.constant 0 : index
    %5 = vector.load %arg6[%c0_6, %c0_7] : memref<128x128xf32, #tpu.memory_space<vmem>>, vector<128x128xf32>
    %cst_8 = arith.constant dense<0.000000e+00> : vector<2x128xf32>
    %6 = tpu.matmul %3, %4, %cst_8 {dimension_numbers = #tpu.dot_dimension_numbers<[1], [0], [0], [1], [0, 0, 1, 1], [], []>} : vector<2x128xf32>, vector<128x128xf32>, vector<2x128xf32> -> vector<2x128xf32>
    %cst_9 = arith.constant dense<0.000000e+00> : vector<2x128xf32>
    %7 = tpu.matmul %6, %5, %cst_9 {dimension_numbers = #tpu.dot_dimension_numbers<[1], [0], [0], [1], [0, 0, 1, 1], [], []>} : vector<2x128xf32>, vector<128x128xf32>, vector<2x128xf32> -> vector<2x128xf32>
    %8 = arith.addf %7, %1 : vector<2x128xf32>
    %c0_10 = arith.constant 0 : index
    %c0_11 = arith.constant 0 : index
    %9 = vector.load %arg13[%c0_10, %c0_11] : memref<8x128xf32, #tpu.memory_space<vmem>>, vector<1x128xf32>
    %c1 = arith.constant 1 : index
    %c0_12 = arith.constant 0 : index
    %10 = vector.load %arg13[%c1, %c0_12] : memref<8x128xf32, #tpu.memory_space<vmem>>, vector<1x128xf32>
    %cst_13 = arith.constant dense<0.000000e+00> : vector<2xf32>
    %11 = vector.multi_reduction <add>, %8, %cst_13 [1] : vector<2x128xf32> to vector<2xf32>
    %12 = vector.shape_cast %11 : vector<2xf32> to vector<2x1xf32>
    %cst_14 = arith.constant 1.280000e+02 : f32
    %13 = vector.broadcast %cst_14 : f32 to vector<2x1xf32>
    %14 = arith.divf %12, %13 : vector<2x1xf32>
    %15 = vector.broadcast %14 : vector<2x1xf32> to vector<2x128xf32>
    %16 = arith.subf %8, %15 : vector<2x128xf32>
    %17 = arith.mulf %16, %16 : vector<2x128xf32>
    %cst_15 = arith.constant dense<0.000000e+00> : vector<2xf32>
    %18 = vector.multi_reduction <add>, %17, %cst_15 [1] : vector<2x128xf32> to vector<2xf32>
    %19 = vector.shape_cast %18 : vector<2xf32> to vector<2x1xf32>
    %cst_16 = arith.constant 1.280000e+02 : f32
    %20 = vector.broadcast %cst_16 : f32 to vector<2x1xf32>
    %21 = arith.divf %19, %20 : vector<2x1xf32>
    %22 = vector.broadcast %14 : vector<2x1xf32> to vector<2x128xf32>
    %23 = arith.subf %8, %22 : vector<2x128xf32>
    %cst_17 = arith.constant 9.99999974E-6 : f32
    %24 = vector.broadcast %cst_17 : f32 to vector<2x1xf32>
    %25 = arith.addf %21, %24 : vector<2x1xf32>
    %26 = math.rsqrt %25 : vector<2x1xf32>
    %27 = vector.broadcast %26 : vector<2x1xf32> to vector<2x128xf32>
    %28 = arith.mulf %23, %27 : vector<2x128xf32>
    %29 = vector.broadcast %9 : vector<1x128xf32> to vector<2x128xf32>
    %30 = arith.mulf %28, %29 : vector<2x128xf32>
    %31 = vector.broadcast %10 : vector<1x128xf32> to vector<2x128xf32>
    %32 = arith.addf %30, %31 : vector<2x128xf32>
    %c0_18 = arith.constant 0 : index
    %c0_19 = arith.constant 0 : index
    %33 = vector.load %arg4[%c0_18, %c0_19] : memref<128x128xf32, #tpu.memory_space<vmem>>, vector<128x128xf32>
    %cst_20 = arith.constant dense<0.000000e+00> : vector<2x128xf32>
    %34 = tpu.matmul %32, %33, %cst_20 {dimension_numbers = #tpu.dot_dimension_numbers<[1], [0], [0], [1], [0, 0, 1, 1], [], []>} : vector<2x128xf32>, vector<128x128xf32>, vector<2x128xf32> -> vector<2x128xf32>
    %c0_21 = arith.constant 0 : index
    %c0_22 = arith.constant 0 : index
    %35 = vector.load %arg7[%c0_21, %c0_22] : memref<128x128xf32, #tpu.memory_space<vmem>>, vector<128x128xf32>
    %cst_23 = arith.constant dense<0.000000e+00> : vector<2x128xf32>
    %36 = tpu.matmul %34, %35, %cst_23 {dimension_numbers = #tpu.dot_dimension_numbers<[1], [0], [0], [1], [0, 0, 1, 1], [], []>} : vector<2x128xf32>, vector<128x128xf32>, vector<2x128xf32> -> vector<2x128xf32>
    %c0_24 = arith.constant 0 : index
    %c0_25 = arith.constant 0 : index
    %c0_26 = arith.constant 0 : index
    %37 = vector.load %arg9[%c0_24, %c0_25, %c0_26] : memref<2x8x128xf32, #tpu.memory_space<vmem>>, vector<2x8x128xf32>
    %c0_27 = arith.constant 0 : index
    %c0_28 = arith.constant 0 : index
    %c0_29 = arith.constant 0 : index
    %38 = vector.load %arg10[%c0_27, %c0_28, %c0_29] : memref<2x8x128xf32, #tpu.memory_space<vmem>>, vector<2x8x128xf32>
    %c0_30 = arith.constant 0 : index
    %c0_31 = arith.constant 0 : index
    %c0_32 = arith.constant 0 : index
    %c0_33 = arith.constant 0 : index
    %39 = vector.load %arg2[%c0_30, %c0_31, %c0_32, %c0_33] : memref<1x4x2x8xf32, #tpu.memory_space<vmem>>, vector<1x4x2x8xf32>
    %cst_34 = arith.constant 0.000000e+00 : f32
    %40 = vector.broadcast %cst_34 : f32 to vector<2x128xf32>
    %41 = vector.extract_strided_slice %36 {offsets = [0, 0], sizes = [2, 32], strides = [1, 1]} : vector<2x128xf32> to vector<2x32xf32>
    %42 = vector.shape_cast %41 : vector<2x32xf32> to vector<2x1x32xf32>
    %43 = vector.extract_strided_slice %37 {offsets = [0, 0, 0], sizes = [2, 8, 32], strides = [1, 1, 1]} : vector<2x8x128xf32> to vector<2x8x32xf32>
    %44 = vector.broadcast %42 : vector<2x1x32xf32> to vector<2x8x32xf32>
    %45 = arith.mulf %44, %43 : vector<2x8x32xf32>
    %cst_35 = arith.constant dense<0.000000e+00> : vector<2x8xf32>
    %46 = vector.multi_reduction <add>, %45, %cst_35 [2] : vector<2x8x32xf32> to vector<2x8xf32>
    %cst_36 = arith.constant 0.176776692 : f32
    %47 = vector.broadcast %cst_36 : f32 to vector<2x8xf32>
    %48 = arith.mulf %46, %47 : vector<2x8xf32>
    %49 = vector.extract_strided_slice %39 {offsets = [0, 0, 0, 0], sizes = [1, 1, 2, 8], strides = [1, 1, 1, 1]} : vector<1x4x2x8xf32> to vector<1x1x2x8xf32>
    %50 = vector.shape_cast %49 : vector<1x1x2x8xf32> to vector<2x8xf32>
    %cst_37 = arith.constant -9.99999995E+11 : f32
    %51 = vector.broadcast %cst_37 : f32 to vector<2x8xf32>
    %52 = arith.mulf %50, %51 : vector<2x8xf32>
    %53 = arith.addf %48, %52 : vector<2x8xf32>
    %cst_38 = arith.constant dense<0xFF800000> : vector<2xf32>
    %54 = vector.multi_reduction <maximumf>, %53, %cst_38 [1] : vector<2x8xf32> to vector<2xf32>
    %55 = vector.shape_cast %54 : vector<2xf32> to vector<2x1xf32>
    %56 = vector.broadcast %55 : vector<2x1xf32> to vector<2x8xf32>
    %57 = arith.subf %53, %56 : vector<2x8xf32>
    %58 = math.exp %57 : vector<2x8xf32>
    %cst_39 = arith.constant dense<0.000000e+00> : vector<2xf32>
    %59 = vector.multi_reduction <add>, %58, %cst_39 [1] : vector<2x8xf32> to vector<2xf32>
    %60 = vector.shape_cast %59 : vector<2xf32> to vector<2x1xf32>
    %61 = vector.broadcast %60 : vector<2x1xf32> to vector<2x8xf32>
    %62 = arith.divf %58, %61 : vector<2x8xf32>
    %63 = vector.shape_cast %62 : vector<2x8xf32> to vector<2x8x1xf32>
    %64 = vector.extract_strided_slice %38 {offsets = [0, 0, 0], sizes = [2, 8, 32], strides = [1, 1, 1]} : vector<2x8x128xf32> to vector<2x8x32xf32>
    %65 = vector.broadcast %63 : vector<2x8x1xf32> to vector<2x8x32xf32>
    %66 = arith.mulf %65, %64 : vector<2x8x32xf32>
    %cst_40 = arith.constant dense<0.000000e+00> : vector<2x32xf32>
    %67 = vector.multi_reduction <add>, %66, %cst_40 [1] : vector<2x8x32xf32> to vector<2x32xf32>
    %c0_41 = arith.constant 0 : index
    %c0_42 = arith.constant 0 : index
    %68 = vector.load %arg8[%c0_41, %c0_42] : memref<128x128xf32, #tpu.memory_space<vmem>>, vector<32x128xf32>
    %cst_43 = arith.constant dense<0.000000e+00> : vector<2x128xf32>
    %69 = tpu.matmul %67, %68, %cst_43 {dimension_numbers = #tpu.dot_dimension_numbers<[1], [0], [0], [1], [0, 0, 1, 1], [], []>} : vector<2x32xf32>, vector<32x128xf32>, vector<2x128xf32> -> vector<2x128xf32>
    %70 = arith.addf %40, %69 : vector<2x128xf32>
    %71 = vector.extract_strided_slice %36 {offsets = [0, 32], sizes = [2, 32], strides = [1, 1]} : vector<2x128xf32> to vector<2x32xf32>
    %72 = vector.shape_cast %71 : vector<2x32xf32> to vector<2x1x32xf32>
    %73 = vector.extract_strided_slice %37 {offsets = [0, 0, 32], sizes = [2, 8, 32], strides = [1, 1, 1]} : vector<2x8x128xf32> to vector<2x8x32xf32>
    %74 = vector.broadcast %72 : vector<2x1x32xf32> to vector<2x8x32xf32>
    %75 = arith.mulf %74, %73 : vector<2x8x32xf32>
    %cst_44 = arith.constant dense<0.000000e+00> : vector<2x8xf32>
    %76 = vector.multi_reduction <add>, %75, %cst_44 [2] : vector<2x8x32xf32> to vector<2x8xf32>
    %cst_45 = arith.constant 0.176776692 : f32
    %77 = vector.broadcast %cst_45 : f32 to vector<2x8xf32>
    %78 = arith.mulf %76, %77 : vector<2x8xf32>
    %79 = vector.extract_strided_slice %39 {offsets = [0, 1, 0, 0], sizes = [1, 1, 2, 8], strides = [1, 1, 1, 1]} : vector<1x4x2x8xf32> to vector<1x1x2x8xf32>
    %80 = vector.shape_cast %79 : vector<1x1x2x8xf32> to vector<2x8xf32>
    %cst_46 = arith.constant -9.99999995E+11 : f32
    %81 = vector.broadcast %cst_46 : f32 to vector<2x8xf32>
    %82 = arith.mulf %80, %81 : vector<2x8xf32>
    %83 = arith.addf %78, %82 : vector<2x8xf32>
    %cst_47 = arith.constant dense<0xFF800000> : vector<2xf32>
    %84 = vector.multi_reduction <maximumf>, %83, %cst_47 [1] : vector<2x8xf32> to vector<2xf32>
    %85 = vector.shape_cast %84 : vector<2xf32> to vector<2x1xf32>
    %86 = vector.broadcast %85 : vector<2x1xf32> to vector<2x8xf32>
    %87 = arith.subf %83, %86 : vector<2x8xf32>
    %88 = math.exp %87 : vector<2x8xf32>
    %cst_48 = arith.constant dense<0.000000e+00> : vector<2xf32>
    %89 = vector.multi_reduction <add>, %88, %cst_48 [1] : vector<2x8xf32> to vector<2xf32>
    %90 = vector.shape_cast %89 : vector<2xf32> to vector<2x1xf32>
    %91 = vector.broadcast %90 : vector<2x1xf32> to vector<2x8xf32>
    %92 = arith.divf %88, %91 : vector<2x8xf32>
    %93 = vector.shape_cast %92 : vector<2x8xf32> to vector<2x8x1xf32>
    %94 = vector.extract_strided_slice %38 {offsets = [0, 0, 32], sizes = [2, 8, 32], strides = [1, 1, 1]} : vector<2x8x128xf32> to vector<2x8x32xf32>
    %95 = vector.broadcast %93 : vector<2x8x1xf32> to vector<2x8x32xf32>
    %96 = arith.mulf %95, %94 : vector<2x8x32xf32>
    %cst_49 = arith.constant dense<0.000000e+00> : vector<2x32xf32>
    %97 = vector.multi_reduction <add>, %96, %cst_49 [1] : vector<2x8x32xf32> to vector<2x32xf32>
    %c32 = arith.constant 32 : index
    %c0_50 = arith.constant 0 : index
    %98 = vector.load %arg8[%c32, %c0_50] : memref<128x128xf32, #tpu.memory_space<vmem>>, vector<32x128xf32>
    %cst_51 = arith.constant dense<0.000000e+00> : vector<2x128xf32>
    %99 = tpu.matmul %97, %98, %cst_51 {dimension_numbers = #tpu.dot_dimension_numbers<[1], [0], [0], [1], [0, 0, 1, 1], [], []>} : vector<2x32xf32>, vector<32x128xf32>, vector<2x128xf32> -> vector<2x128xf32>
    %100 = arith.addf %70, %99 : vector<2x128xf32>
    %101 = vector.extract_strided_slice %36 {offsets = [0, 64], sizes = [2, 32], strides = [1, 1]} : vector<2x128xf32> to vector<2x32xf32>
    %102 = vector.shape_cast %101 : vector<2x32xf32> to vector<2x1x32xf32>
    %103 = vector.extract_strided_slice %37 {offsets = [0, 0, 64], sizes = [2, 8, 32], strides = [1, 1, 1]} : vector<2x8x128xf32> to vector<2x8x32xf32>
    %104 = vector.broadcast %102 : vector<2x1x32xf32> to vector<2x8x32xf32>
    %105 = arith.mulf %104, %103 : vector<2x8x32xf32>
    %cst_52 = arith.constant dense<0.000000e+00> : vector<2x8xf32>
    %106 = vector.multi_reduction <add>, %105, %cst_52 [2] : vector<2x8x32xf32> to vector<2x8xf32>
    %cst_53 = arith.constant 0.176776692 : f32
    %107 = vector.broadcast %cst_53 : f32 to vector<2x8xf32>
    %108 = arith.mulf %106, %107 : vector<2x8xf32>
    %109 = vector.extract_strided_slice %39 {offsets = [0, 2, 0, 0], sizes = [1, 1, 2, 8], strides = [1, 1, 1, 1]} : vector<1x4x2x8xf32> to vector<1x1x2x8xf32>
    %110 = vector.shape_cast %109 : vector<1x1x2x8xf32> to vector<2x8xf32>
    %cst_54 = arith.constant -9.99999995E+11 : f32
    %111 = vector.broadcast %cst_54 : f32 to vector<2x8xf32>
    %112 = arith.mulf %110, %111 : vector<2x8xf32>
    %113 = arith.addf %108, %112 : vector<2x8xf32>
    %cst_55 = arith.constant dense<0xFF800000> : vector<2xf32>
    %114 = vector.multi_reduction <maximumf>, %113, %cst_55 [1] : vector<2x8xf32> to vector<2xf32>
    %115 = vector.shape_cast %114 : vector<2xf32> to vector<2x1xf32>
    %116 = vector.broadcast %115 : vector<2x1xf32> to vector<2x8xf32>
    %117 = arith.subf %113, %116 : vector<2x8xf32>
    %118 = math.exp %117 : vector<2x8xf32>
    %cst_56 = arith.constant dense<0.000000e+00> : vector<2xf32>
    %119 = vector.multi_reduction <add>, %118, %cst_56 [1] : vector<2x8xf32> to vector<2xf32>
    %120 = vector.shape_cast %119 : vector<2xf32> to vector<2x1xf32>
    %121 = vector.broadcast %120 : vector<2x1xf32> to vector<2x8xf32>
    %122 = arith.divf %118, %121 : vector<2x8xf32>
    %123 = vector.shape_cast %122 : vector<2x8xf32> to vector<2x8x1xf32>
    %124 = vector.extract_strided_slice %38 {offsets = [0, 0, 64], sizes = [2, 8, 32], strides = [1, 1, 1]} : vector<2x8x128xf32> to vector<2x8x32xf32>
    %125 = vector.broadcast %123 : vector<2x8x1xf32> to vector<2x8x32xf32>
    %126 = arith.mulf %125, %124 : vector<2x8x32xf32>
    %cst_57 = arith.constant dense<0.000000e+00> : vector<2x32xf32>
    %127 = vector.multi_reduction <add>, %126, %cst_57 [1] : vector<2x8x32xf32> to vector<2x32xf32>
    %c64 = arith.constant 64 : index
    %c0_58 = arith.constant 0 : index
    %128 = vector.load %arg8[%c64, %c0_58] : memref<128x128xf32, #tpu.memory_space<vmem>>, vector<32x128xf32>
    %cst_59 = arith.constant dense<0.000000e+00> : vector<2x128xf32>
    %129 = tpu.matmul %127, %128, %cst_59 {dimension_numbers = #tpu.dot_dimension_numbers<[1], [0], [0], [1], [0, 0, 1, 1], [], []>} : vector<2x32xf32>, vector<32x128xf32>, vector<2x128xf32> -> vector<2x128xf32>
    %130 = arith.addf %100, %129 : vector<2x128xf32>
    %131 = vector.extract_strided_slice %36 {offsets = [0, 96], sizes = [2, 32], strides = [1, 1]} : vector<2x128xf32> to vector<2x32xf32>
    %132 = vector.shape_cast %131 : vector<2x32xf32> to vector<2x1x32xf32>
    %133 = vector.extract_strided_slice %37 {offsets = [0, 0, 96], sizes = [2, 8, 32], strides = [1, 1, 1]} : vector<2x8x128xf32> to vector<2x8x32xf32>
    %134 = vector.broadcast %132 : vector<2x1x32xf32> to vector<2x8x32xf32>
    %135 = arith.mulf %134, %133 : vector<2x8x32xf32>
    %cst_60 = arith.constant dense<0.000000e+00> : vector<2x8xf32>
    %136 = vector.multi_reduction <add>, %135, %cst_60 [2] : vector<2x8x32xf32> to vector<2x8xf32>
    %cst_61 = arith.constant 0.176776692 : f32
    %137 = vector.broadcast %cst_61 : f32 to vector<2x8xf32>
    %138 = arith.mulf %136, %137 : vector<2x8xf32>
    %139 = vector.extract_strided_slice %39 {offsets = [0, 3, 0, 0], sizes = [1, 1, 2, 8], strides = [1, 1, 1, 1]} : vector<1x4x2x8xf32> to vector<1x1x2x8xf32>
    %140 = vector.shape_cast %139 : vector<1x1x2x8xf32> to vector<2x8xf32>
    %cst_62 = arith.constant -9.99999995E+11 : f32
    %141 = vector.broadcast %cst_62 : f32 to vector<2x8xf32>
    %142 = arith.mulf %140, %141 : vector<2x8xf32>
    %143 = arith.addf %138, %142 : vector<2x8xf32>
    %cst_63 = arith.constant dense<0xFF800000> : vector<2xf32>
    %144 = vector.multi_reduction <maximumf>, %143, %cst_63 [1] : vector<2x8xf32> to vector<2xf32>
    %145 = vector.shape_cast %144 : vector<2xf32> to vector<2x1xf32>
    %146 = vector.broadcast %145 : vector<2x1xf32> to vector<2x8xf32>
    %147 = arith.subf %143, %146 : vector<2x8xf32>
    %148 = math.exp %147 : vector<2x8xf32>
    %cst_64 = arith.constant dense<0.000000e+00> : vector<2xf32>
    %149 = vector.multi_reduction <add>, %148, %cst_64 [1] : vector<2x8xf32> to vector<2xf32>
    %150 = vector.shape_cast %149 : vector<2xf32> to vector<2x1xf32>
    %151 = vector.broadcast %150 : vector<2x1xf32> to vector<2x8xf32>
    %152 = arith.divf %148, %151 : vector<2x8xf32>
    %153 = vector.shape_cast %152 : vector<2x8xf32> to vector<2x8x1xf32>
    %154 = vector.extract_strided_slice %38 {offsets = [0, 0, 96], sizes = [2, 8, 32], strides = [1, 1, 1]} : vector<2x8x128xf32> to vector<2x8x32xf32>
    %155 = vector.broadcast %153 : vector<2x8x1xf32> to vector<2x8x32xf32>
    %156 = arith.mulf %155, %154 : vector<2x8x32xf32>
    %cst_65 = arith.constant dense<0.000000e+00> : vector<2x32xf32>
    %157 = vector.multi_reduction <add>, %156, %cst_65 [1] : vector<2x8x32xf32> to vector<2x32xf32>
    %c96 = arith.constant 96 : index
    %c0_66 = arith.constant 0 : index
    %158 = vector.load %arg8[%c96, %c0_66] : memref<128x128xf32, #tpu.memory_space<vmem>>, vector<32x128xf32>
    %cst_67 = arith.constant dense<0.000000e+00> : vector<2x128xf32>
    %159 = tpu.matmul %157, %158, %cst_67 {dimension_numbers = #tpu.dot_dimension_numbers<[1], [0], [0], [1], [0, 0, 1, 1], [], []>} : vector<2x32xf32>, vector<32x128xf32>, vector<2x128xf32> -> vector<2x128xf32>
    %160 = arith.addf %130, %159 : vector<2x128xf32>
    %161 = arith.addf %160, %32 : vector<2x128xf32>
    %c2 = arith.constant 2 : index
    %c0_68 = arith.constant 0 : index
    %162 = vector.load %arg13[%c2, %c0_68] : memref<8x128xf32, #tpu.memory_space<vmem>>, vector<1x128xf32>
    %c3 = arith.constant 3 : index
    %c0_69 = arith.constant 0 : index
    %163 = vector.load %arg13[%c3, %c0_69] : memref<8x128xf32, #tpu.memory_space<vmem>>, vector<1x128xf32>
    %cst_70 = arith.constant dense<0.000000e+00> : vector<2xf32>
    %164 = vector.multi_reduction <add>, %161, %cst_70 [1] : vector<2x128xf32> to vector<2xf32>
    %165 = vector.shape_cast %164 : vector<2xf32> to vector<2x1xf32>
    %cst_71 = arith.constant 1.280000e+02 : f32
    %166 = vector.broadcast %cst_71 : f32 to vector<2x1xf32>
    %167 = arith.divf %165, %166 : vector<2x1xf32>
    %168 = vector.broadcast %167 : vector<2x1xf32> to vector<2x128xf32>
    %169 = arith.subf %161, %168 : vector<2x128xf32>
    %170 = arith.mulf %169, %169 : vector<2x128xf32>
    %cst_72 = arith.constant dense<0.000000e+00> : vector<2xf32>
    %171 = vector.multi_reduction <add>, %170, %cst_72 [1] : vector<2x128xf32> to vector<2xf32>
    %172 = vector.shape_cast %171 : vector<2xf32> to vector<2x1xf32>
    %cst_73 = arith.constant 1.280000e+02 : f32
    %173 = vector.broadcast %cst_73 : f32 to vector<2x1xf32>
    %174 = arith.divf %172, %173 : vector<2x1xf32>
    %175 = vector.broadcast %167 : vector<2x1xf32> to vector<2x128xf32>
    %176 = arith.subf %161, %175 : vector<2x128xf32>
    %cst_74 = arith.constant 9.99999974E-6 : f32
    %177 = vector.broadcast %cst_74 : f32 to vector<2x1xf32>
    %178 = arith.addf %174, %177 : vector<2x1xf32>
    %179 = math.rsqrt %178 : vector<2x1xf32>
    %180 = vector.broadcast %179 : vector<2x1xf32> to vector<2x128xf32>
    %181 = arith.mulf %176, %180 : vector<2x128xf32>
    %182 = vector.broadcast %162 : vector<1x128xf32> to vector<2x128xf32>
    %183 = arith.mulf %181, %182 : vector<2x128xf32>
    %184 = vector.broadcast %163 : vector<1x128xf32> to vector<2x128xf32>
    %185 = arith.addf %183, %184 : vector<2x128xf32>
    %c0_75 = arith.constant 0 : index
    %c0_76 = arith.constant 0 : index
    %186 = vector.load %arg11[%c0_75, %c0_76] : memref<128x128xf32, #tpu.memory_space<vmem>>, vector<128x128xf32>
    %c0_77 = arith.constant 0 : index
    %c0_78 = arith.constant 0 : index
    %187 = vector.load %arg12[%c0_77, %c0_78] : memref<128x128xf32, #tpu.memory_space<vmem>>, vector<128x128xf32>
    %cst_79 = arith.constant dense<0.000000e+00> : vector<2x128xf32>
    %188 = tpu.matmul %185, %186, %cst_79 {dimension_numbers = #tpu.dot_dimension_numbers<[1], [0], [0], [1], [0, 0, 1, 1], [], []>} : vector<2x128xf32>, vector<128x128xf32>, vector<2x128xf32> -> vector<2x128xf32>
    %cst_80 = arith.constant dense<0.000000e+00> : vector<2x128xf32>
    %189 = tpu.matmul %188, %187, %cst_80 {dimension_numbers = #tpu.dot_dimension_numbers<[1], [0], [0], [1], [0, 0, 1, 1], [], []>} : vector<2x128xf32>, vector<128x128xf32>, vector<2x128xf32> -> vector<2x128xf32>
    %190 = arith.addf %189, %185 : vector<2x128xf32>
    %c4 = arith.constant 4 : index
    %c0_81 = arith.constant 0 : index
    %191 = vector.load %arg13[%c4, %c0_81] : memref<8x128xf32, #tpu.memory_space<vmem>>, vector<1x128xf32>
    %c5 = arith.constant 5 : index
    %c0_82 = arith.constant 0 : index
    %192 = vector.load %arg13[%c5, %c0_82] : memref<8x128xf32, #tpu.memory_space<vmem>>, vector<1x128xf32>
    %cst_83 = arith.constant dense<0.000000e+00> : vector<2xf32>
    %193 = vector.multi_reduction <add>, %190, %cst_83 [1] : vector<2x128xf32> to vector<2xf32>
    %194 = vector.shape_cast %193 : vector<2xf32> to vector<2x1xf32>
    %cst_84 = arith.constant 1.280000e+02 : f32
    %195 = vector.broadcast %cst_84 : f32 to vector<2x1xf32>
    %196 = arith.divf %194, %195 : vector<2x1xf32>
    %197 = vector.broadcast %196 : vector<2x1xf32> to vector<2x128xf32>
    %198 = arith.subf %190, %197 : vector<2x128xf32>
    %199 = arith.mulf %198, %198 : vector<2x128xf32>
    %cst_85 = arith.constant dense<0.000000e+00> : vector<2xf32>
    %200 = vector.multi_reduction <add>, %199, %cst_85 [1] : vector<2x128xf32> to vector<2xf32>
    %201 = vector.shape_cast %200 : vector<2xf32> to vector<2x1xf32>
    %cst_86 = arith.constant 1.280000e+02 : f32
    %202 = vector.broadcast %cst_86 : f32 to vector<2x1xf32>
    %203 = arith.divf %201, %202 : vector<2x1xf32>
    %204 = vector.broadcast %196 : vector<2x1xf32> to vector<2x128xf32>
    %205 = arith.subf %190, %204 : vector<2x128xf32>
    %cst_87 = arith.constant 9.99999974E-6 : f32
    %206 = vector.broadcast %cst_87 : f32 to vector<2x1xf32>
    %207 = arith.addf %203, %206 : vector<2x1xf32>
    %208 = math.rsqrt %207 : vector<2x1xf32>
    %209 = vector.broadcast %208 : vector<2x1xf32> to vector<2x128xf32>
    %210 = arith.mulf %205, %209 : vector<2x128xf32>
    %211 = vector.broadcast %191 : vector<1x128xf32> to vector<2x128xf32>
    %212 = arith.mulf %210, %211 : vector<2x128xf32>
    %213 = vector.broadcast %192 : vector<1x128xf32> to vector<2x128xf32>
    %214 = arith.addf %212, %213 : vector<2x128xf32>
    %c0_88 = arith.constant 0 : index
    %c0_89 = arith.constant 0 : index
    %215 = vector.load %arg14[%c0_88, %c0_89] : memref<128x256xf32, #tpu.memory_space<vmem>>, vector<128x256xf32>
    %cst_90 = arith.constant dense<0.000000e+00> : vector<2x256xf32>
    %216 = tpu.matmul %214, %215, %cst_90 {dimension_numbers = #tpu.dot_dimension_numbers<[1], [0], [0], [1], [0, 0, 1, 1], [], []>} : vector<2x128xf32>, vector<128x256xf32>, vector<2x256xf32> -> vector<2x256xf32>
    %c0_91 = arith.constant 0 : index
    %c0_92 = arith.constant 0 : index
    %217 = vector.load %arg15[%c0_91, %c0_92] : memref<1x256xf32, #tpu.memory_space<vmem>>, vector<1x256xf32>
    %218 = vector.broadcast %217 : vector<1x256xf32> to vector<2x256xf32>
    %219 = arith.addf %216, %218 : vector<2x256xf32>
    %cst_93 = arith.constant 5.000000e-01 : f32
    %220 = vector.broadcast %cst_93 : f32 to vector<2x256xf32>
    %221 = arith.mulf %220, %219 : vector<2x256xf32>
    %cst_94 = arith.constant 0.707106769 : f32
    %222 = vector.broadcast %cst_94 : f32 to vector<2x256xf32>
    %223 = arith.mulf %219, %222 : vector<2x256xf32>
    %224 = math.erf %223 : vector<2x256xf32>
    %cst_95 = arith.constant 1.000000e+00 : f32
    %225 = vector.broadcast %cst_95 : f32 to vector<2x256xf32>
    %226 = arith.addf %225, %224 : vector<2x256xf32>
    %227 = arith.mulf %221, %226 : vector<2x256xf32>
    %c0_96 = arith.constant 0 : index
    %c0_97 = arith.constant 0 : index
    %228 = vector.load %arg16[%c0_96, %c0_97] : memref<256x128xf32, #tpu.memory_space<vmem>>, vector<256x128xf32>
    %cst_98 = arith.constant dense<0.000000e+00> : vector<2x128xf32>
    %229 = tpu.matmul %227, %228, %cst_98 {dimension_numbers = #tpu.dot_dimension_numbers<[1], [0], [0], [1], [0, 0, 1, 1], [], []>} : vector<2x256xf32>, vector<256x128xf32>, vector<2x128xf32> -> vector<2x128xf32>
    %c0_99 = arith.constant 0 : index
    %c0_100 = arith.constant 0 : index
    %230 = vector.load %arg17[%c0_99, %c0_100] : memref<1x128xf32, #tpu.memory_space<vmem>>, vector<1x128xf32>
    %231 = vector.broadcast %230 : vector<1x128xf32> to vector<2x128xf32>
    %232 = arith.addf %229, %231 : vector<2x128xf32>
    %233 = arith.addf %232, %214 : vector<2x128xf32>
    %c6 = arith.constant 6 : index
    %c0_101 = arith.constant 0 : index
    %234 = vector.load %arg13[%c6, %c0_101] : memref<8x128xf32, #tpu.memory_space<vmem>>, vector<1x128xf32>
    %c7 = arith.constant 7 : index
    %c0_102 = arith.constant 0 : index
    %235 = vector.load %arg13[%c7, %c0_102] : memref<8x128xf32, #tpu.memory_space<vmem>>, vector<1x128xf32>
    %cst_103 = arith.constant dense<0.000000e+00> : vector<2xf32>
    %236 = vector.multi_reduction <add>, %233, %cst_103 [1] : vector<2x128xf32> to vector<2xf32>
    %237 = vector.shape_cast %236 : vector<2xf32> to vector<2x1xf32>
    %cst_104 = arith.constant 1.280000e+02 : f32
    %238 = vector.broadcast %cst_104 : f32 to vector<2x1xf32>
    %239 = arith.divf %237, %238 : vector<2x1xf32>
    %240 = vector.broadcast %239 : vector<2x1xf32> to vector<2x128xf32>
    %241 = arith.subf %233, %240 : vector<2x128xf32>
    %242 = arith.mulf %241, %241 : vector<2x128xf32>
    %cst_105 = arith.constant dense<0.000000e+00> : vector<2xf32>
    %243 = vector.multi_reduction <add>, %242, %cst_105 [1] : vector<2x128xf32> to vector<2xf32>
    %244 = vector.shape_cast %243 : vector<2xf32> to vector<2x1xf32>
    %cst_106 = arith.constant 1.280000e+02 : f32
    %245 = vector.broadcast %cst_106 : f32 to vector<2x1xf32>
    %246 = arith.divf %244, %245 : vector<2x1xf32>
    %247 = vector.broadcast %239 : vector<2x1xf32> to vector<2x128xf32>
    %248 = arith.subf %233, %247 : vector<2x128xf32>
    %cst_107 = arith.constant 9.99999974E-6 : f32
    %249 = vector.broadcast %cst_107 : f32 to vector<2x1xf32>
    %250 = arith.addf %246, %249 : vector<2x1xf32>
    %251 = math.rsqrt %250 : vector<2x1xf32>
    %252 = vector.broadcast %251 : vector<2x1xf32> to vector<2x128xf32>
    %253 = arith.mulf %248, %252 : vector<2x128xf32>
    %254 = vector.broadcast %234 : vector<1x128xf32> to vector<2x128xf32>
    %255 = arith.mulf %253, %254 : vector<2x128xf32>
    %256 = vector.broadcast %235 : vector<1x128xf32> to vector<2x128xf32>
    %257 = arith.addf %255, %256 : vector<2x128xf32>
    %c0_108 = arith.constant 0 : index
    %c0_109 = arith.constant 0 : index
    %c0_110 = arith.constant 0 : index
    %258 = vector.load %arg18[%c0_108, %c0_109, %c0_110] : memref<1x2x128xf32, #tpu.memory_space<vmem>>, vector<1x2x128xf32>
    %259 = vector.shape_cast %258 : vector<1x2x128xf32> to vector<2x128xf32>
    %260 = vector.shape_cast %257 : vector<2x128xf32> to vector<1x2x128xf32>
    tpu.vector_store %arg18[%c0_108, %c0_109, %c0_110], %260 {strides = array<i32>} : memref<1x2x128xf32, #tpu.memory_space<vmem>>, vector<1x2x128xf32>,
    %c0_111 = arith.constant 0 : index
    %c0_112 = arith.constant 0 : index
    %c0_113 = arith.constant 0 : index
    %261 = vector.load %arg19[%c0_111, %c0_112, %c0_113] : memref<1x2x128xf32, #tpu.memory_space<vmem>>, vector<1x2x128xf32>
    %262 = vector.shape_cast %261 : vector<1x2x128xf32> to vector<2x128xf32>
    %263 = vector.shape_cast %189 : vector<2x128xf32> to vector<1x2x128xf32>
    tpu.vector_store %arg19[%c0_111, %c0_112, %c0_113], %263 {strides = array<i32>} : memref<1x2x128xf32, #tpu.memory_space<vmem>>, vector<1x2x128xf32>,
    return
  }
  func.func @transform_0(%arg0: i32) -> (i32, i32, i32) {
    %c0_i32 = arith.constant 0 : i32
    %c0_i32_0 = arith.constant 0 : i32
    %c0_i32_1 = arith.constant 0 : i32
    return %arg0, %c0_i32, %c0_i32_0 : i32, i32, i32
  }
  func.func @transform_1(%arg0: i32) -> (i32, i32, i32, i32) {
    %c0_i32 = arith.constant 0 : i32
    %c0_i32_0 = arith.constant 0 : i32
    %c0_i32_1 = arith.constant 0 : i32
    %c0_i32_2 = arith.constant 0 : i32
    return %arg0, %c0_i32, %c0_i32_0, %c0_i32_1 : i32, i32, i32, i32
  }
  func.func @transform_2(%arg0: i32) -> (i32, i32) {
    %c0_i32 = arith.constant 0 : i32
    %c0_i32_0 = arith.constant 0 : i32
    %c0_i32_1 = arith.constant 0 : i32
    return %c0_i32, %c0_i32_0 : i32, i32
  }
  func.func @transform_3(%arg0: i32) -> (i32, i32) {
    %c0_i32 = arith.constant 0 : i32
    %c0_i32_0 = arith.constant 0 : i32
    %c0_i32_1 = arith.constant 0 : i32
    return %c0_i32, %c0_i32_0 : i32, i32
  }
  func.func @transform_4(%arg0: i32) -> (i32, i32) {
    %c0_i32 = arith.constant 0 : i32
    %c0_i32_0 = arith.constant 0 : i32
    %c0_i32_1 = arith.constant 0 : i32
    return %c0_i32, %c0_i32_0 : i32, i32
  }
  func.func @transform_5(%arg0: i32) -> (i32, i32) {
    %c0_i32 = arith.constant 0 : i32
    %c0_i32_0 = arith.constant 0 : i32
    %c0_i32_1 = arith.constant 0 : i32
    return %c0_i32, %c0_i32_0 : i32, i32
  }
  func.func @transform_6(%arg0: i32) -> (i32, i32) {
    %c0_i32 = arith.constant 0 : i32
    %c0_i32_0 = arith.constant 0 : i32
    %c0_i32_1 = arith.constant 0 : i32
    return %c0_i32, %c0_i32_0 : i32, i32
  }
  func.func @transform_7(%arg0: i32) -> (i32, i32) {
    %c0_i32 = arith.constant 0 : i32
    %c0_i32_0 = arith.constant 0 : i32
    %c0_i32_1 = arith.constant 0 : i32
    return %c0_i32, %c0_i32_0 : i32, i32
  }
  func.func @transform_8(%arg0: i32) -> (i32, i32, i32) {
    %c0_i32 = arith.constant 0 : i32
    %c0_i32_0 = arith.constant 0 : i32
    %c0_i32_1 = arith.constant 0 : i32
    %c0_i32_2 = arith.constant 0 : i32
    return %c0_i32, %c0_i32_0, %c0_i32_1 : i32, i32, i32
  }
  func.func @transform_9(%arg0: i32) -> (i32, i32, i32) {
    %c0_i32 = arith.constant 0 : i32
    %c0_i32_0 = arith.constant 0 : i32
    %c0_i32_1 = arith.constant 0 : i32
    %c0_i32_2 = arith.constant 0 : i32
    return %c0_i32, %c0_i32_0, %c0_i32_1 : i32, i32, i32
  }
  func.func @transform_10(%arg0: i32) -> (i32, i32) {
    %c0_i32 = arith.constant 0 : i32
    %c0_i32_0 = arith.constant 0 : i32
    %c0_i32_1 = arith.constant 0 : i32
    return %c0_i32, %c0_i32_0 : i32, i32
  }
  func.func @transform_11(%arg0: i32) -> (i32, i32) {
    %c0_i32 = arith.constant 0 : i32
    %c0_i32_0 = arith.constant 0 : i32
    %c0_i32_1 = arith.constant 0 : i32
    return %c0_i32, %c0_i32_0 : i32, i32
  }
  func.func @transform_12(%arg0: i32) -> (i32, i32) {
    %c0_i32 = arith.constant 0 : i32
    %c0_i32_0 = arith.constant 0 : i32
    %c0_i32_1 = arith.constant 0 : i32
    return %c0_i32, %c0_i32_0 : i32, i32
  }
  func.func @transform_13(%arg0: i32) -> (i32, i32) {
    %c0_i32 = arith.constant 0 : i32
    %c0_i32_0 = arith.constant 0 : i32
    %c0_i32_1 = arith.constant 0 : i32
    return %c0_i32, %c0_i32_0 : i32, i32
  }
  func.func @transform_14(%arg0: i32) -> (i32, i32) {
    %c0_i32 = arith.constant 0 : i32
    %c0_i32_0 = arith.constant 0 : i32
    %c0_i32_1 = arith.constant 0 : i32
    return %c0_i32, %c0_i32_0 : i32, i32
  }
  func.func @transform_15(%arg0: i32) -> (i32, i32) {
    %c0_i32 = arith.constant 0 : i32
    %c0_i32_0 = arith.constant 0 : i32
    %c0_i32_1 = arith.constant 0 : i32
    return %c0_i32, %c0_i32_0 : i32, i32
  }
  func.func @transform_16(%arg0: i32) -> (i32, i32) {
    %c0_i32 = arith.constant 0 : i32
    %c0_i32_0 = arith.constant 0 : i32
    %c0_i32_1 = arith.constant 0 : i32
    return %c0_i32, %c0_i32_0 : i32, i32
  }
  func.func @transform_17(%arg0: i32) -> (i32, i32, i32) {
    %c0_i32 = arith.constant 0 : i32
    %c0_i32_0 = arith.constant 0 : i32
    %c0_i32_1 = arith.constant 0 : i32
    return %arg0, %c0_i32, %c0_i32_0 : i32, i32, i32
  }
  func.func @transform_18(%arg0: i32) -> (i32, i32, i32) {
    %c0_i32 = arith.constant 0 : i32
    %c0_i32_0 = arith.constant 0 : i32
    %c0_i32_1 = arith.constant 0 : i32
    return %arg0, %c0_i32, %c0_i32_0 : i32, i32, i32
  }
}

</mosaic_0001>

<llo_original>
// kernel: _decoder_steps.1
$region0: #{_decoder_steps.1}
  #allocation0 [shape = 'u32[]', space=smem, size = 0x4, offset = 0x4, fixed_abs, tag = 'smem constant byte address 0x4 - core index']
  #allocation1 [shape = 'u32[72,128]{1,0:T(1,128)}', space=vmem, size = 0x9000, scoped, tag = 'internal scratch']
  %s0 = inlined_call_operand.hbm [shape: f32[9,2,128], index: 0, kind: input, shape index: {}]
  %s1 = inlined_call_operand.vmem [shape: f32[9,4,2,8], index: 1, kind: input, shape index: {}]
  %s2 = inlined_call_operand.vmem [shape: f32[128,128], index: 2, kind: input, shape index: {}]
  %s3 = inlined_call_operand.hbm [shape: f32[128,128], index: 3, kind: input, shape index: {}]
  %s4 = inlined_call_operand.hbm [shape: f32[128,128], index: 4, kind: input, shape index: {}]
  %s5 = inlined_call_operand.hbm [shape: f32[128,128], index: 5, kind: input, shape index: {}]
  %s6 = inlined_call_operand.hbm [shape: f32[128,128], index: 6, kind: input, shape index: {}]
  %s7 = inlined_call_operand.hbm [shape: f32[128,128], index: 7, kind: input, shape index: {}]
  %s8 = inlined_call_operand.hbm [shape: f32[2,8,128], index: 8, kind: input, shape index: {}]
  %s9 = inlined_call_operand.hbm [shape: f32[2,8,128], index: 9, kind: input, shape index: {}]
  %s10 = inlined_call_operand.hbm [shape: f32[128,128], index: 10, kind: input, shape index: {}]
  %s11 = inlined_call_operand.hbm [shape: f32[128,128], index: 11, kind: input, shape index: {}]
  %s12 = inlined_call_operand.vmem [shape: f32[8,128], index: 12, kind: input, shape index: {}]
  %s13 = inlined_call_operand.hbm [shape: f32[128,256], index: 13, kind: input, shape index: {}]
  %s14 = inlined_call_operand.vmem [shape: f32[1,256], index: 14, kind: input, shape index: {}]
  %s15 = inlined_call_operand.hbm [shape: f32[256,128], index: 15, kind: input, shape index: {}]
  %s16 = inlined_call_operand.vmem [shape: f32[1,128], index: 16, kind: input, shape index: {}]
  %s17 = inlined_call_operand.hbm [shape: f32[9,2,128], index: 17, kind: output, shape index: {0}]
  %s18 = inlined_call_operand.hbm [shape: f32[9,2,128], index: 18, kind: output, shape index: {1}]
  %19 = xla_tuple %s17, %s18
  %s20 = sld [smem:[#allocation0]]
  $region157: #{_decoder_steps.1} parent=0
    _
  %s22 = ssub.s32 1, %s20
  %s23 = scalar_select 0, %s22, %s20
  $region1: #{_decoder_steps.1} parent=0
    #allocation2 [shape = 'u8[2048]{0}', space=vmem, size = 0x800, scoped, tag = 'input window, operand 0']
    #allocation3 [shape = 's32[2]{0}', space=sflag, size = 0x8, scoped, tag = 'scoped memory for _decoder_steps.1']
    #allocation4 [shape = 's32[2]{0}', space=sflag, size = 0x8, scoped, tag = 'scoped memory for _decoder_steps.1']
    #allocation5 [shape = 'u8[65536]{0}', space=vmem, size = 0x10000, scoped, tag = 'input window, operand 3, single buffered']
    #allocation6 [shape = 's32[1]{0}', space=sflag, size = 0x4, scoped, tag = 'scoped memory for _decoder_steps.1']
    #allocation7 [shape = 'u8[65536]{0}', space=vmem, size = 0x10000, scoped, tag = 'input window, operand 4, single buffered']
    #allocation8 [shape = 'u8[65536]{0}', space=vmem, size = 0x10000, scoped, tag = 'input window, operand 5, single buffered']
    #allocation9 [shape = 's32[1]{0}', space=sflag, size = 0x4, scoped, tag = 'scoped memory for _decoder_steps.1']
    #allocation10 [shape = 'u8[65536]{0}', space=vmem, size = 0x10000, scoped, tag = 'input window, operand 6, single buffered']
    #allocation11 [shape = 'u8[65536]{0}', space=vmem, size = 0x10000, scoped, tag = 'input window, operand 7, single buffered']
    #allocation12 [shape = 's32[1]{0}', space=sflag, size = 0x4, scoped, tag = 'scoped memory for _decoder_steps.1']
    #allocation13 [shape = 'u8[8192]{0}', space=vmem, size = 0x2000, scoped, tag = 'input window, operand 8, single buffered']
    #allocation14 [shape = 'u8[8192]{0}', space=vmem, size = 0x2000, scoped, tag = 'input window, operand 9, single buffered']
    #allocation15 [shape = 's32[1]{0}', space=sflag, size = 0x4, scoped, tag = 'scoped memory for _decoder_steps.1']
    #allocation16 [shape = 'u8[65536]{0}', space=vmem, size = 0x10000, scoped, tag = 'input window, operand 10, single buffered']
    #allocation17 [shape = 'u8[65536]{0}', space=vmem, size = 0x10000, scoped, tag = 'input window, operand 11, single buffered']
    #allocation18 [shape = 's32[1]{0}', space=sflag, size = 0x4, scoped, tag = 'scoped memory for _decoder_steps.1']
    #allocation19 [shape = 'u8[131072]{0}', space=vmem, size = 0x20000, scoped, tag = 'input window, operand 13, single buffered']
    #allocation20 [shape = 'u8[131072]{0}', space=vmem, size = 0x20000, scoped, tag = 'input window, operand 15, single buffered']
    #allocation21 [shape = 's32[1]{0}', space=sflag, size = 0x4, scoped, tag = 'scoped memory for _decoder_steps.1']
    #allocation22 [shape = 'u8[2048]{0}', space=vmem, size = 0x800, scoped, tag = 'output window, operand 0']
    #allocation23 [shape = 'u8[2048]{0}', space=vmem, size = 0x800, scoped, tag = 'output window, operand 1']
    #allocation24 [shape = 's32[2]{0}', space=sflag, size = 0x8, scoped, tag = 'scoped memory for _decoder_steps.1']
    %24 = vsyncpa [#allocation3], 0
    %s25 = scalar_lea.sflag [#allocation3], 1
    %26 = vsyncpa %s25, 0
    %27 = vsyncpa [#allocation6], 0
    %28 = vsyncpa [#allocation9], 0
    %29 = vsyncpa [#allocation12], 0
    %30 = vsyncpa [#allocation15], 0
    %31 = vsyncpa [#allocation18], 0
    %32 = vsyncpa [#allocation21], 0
    %33 = vsyncpa [#allocation4], 0
    %s34 = scalar_lea.sflag [#allocation4], 1
    %35 = vsyncpa %s34, 0
    %36 = vsyncpa [#allocation24], 0
    %s37 = scalar_lea.sflag [#allocation24], 1
    %38 = vsyncpa %s37, 0
    loop: start=0, step=1, limit=11
    $region2: #{_decoder_steps.1} parent=1 // loop_pre_header
      _
    $region3: #{_decoder_steps.1} parent=1 // loop_header
      %s40 = sphi 0, %s44
      %p41 = scmp.ge.s32.totalorder %s40, 11
      %s50 = sphi 0, %s52
      %s53 = sphi 0, %s50
      %s54 = sphi 0, %s53
      %s70 = sphi 0, %s54
      %s76 = sphi 0, %s78
      %s79 = sphi 0, %s76
      %s80 = sphi 0, %s79
      %s96 = sphi 0, %s80
      %s100 = sphi 0, %s100
      %s102 = sphi 0, %s100
      %s103 = sphi 0, %s102
      %s117 = sphi 0, %s103
      %s121 = sphi 0, %s121
      %s123 = sphi 0, %s121
      %s124 = sphi 0, %s123
      %s138 = sphi 0, %s124
      %s142 = sphi 0, %s142
      %s144 = sphi 0, %s142
      %s145 = sphi 0, %s144
      %s159 = sphi 0, %s145
      %s163 = sphi 0, %s163
      %s165 = sphi 0, %s163
      %s166 = sphi 0, %s165
      %s180 = sphi 0, %s166
      %s184 = sphi 0, %s184
      %s186 = sphi 0, %s184
      %s187 = sphi 0, %s186
      %s201 = sphi 0, %s187
      %s205 = sphi 0, %s205
      %s207 = sphi 0, %s205
      %s208 = sphi 0, %s207
      %s222 = sphi 0, %s208
      %s226 = sphi 0, %s226
      %s228 = sphi 0, %s226
      %s229 = sphi 0, %s228
      %s243 = sphi 0, %s229
      %s247 = sphi 0, %s247
      %s249 = sphi 0, %s247
      %s250 = sphi 0, %s249
      %s264 = sphi 0, %s250
      %s268 = sphi 0, %s268
      %s270 = sphi 0, %s268
      %s271 = sphi 0, %s270
      %s285 = sphi 0, %s271
      %s289 = sphi 0, %s289
      %s291 = sphi 0, %s289
      %s292 = sphi 0, %s291
      %s306 = sphi 0, %s292
      %s310 = sphi 0, %s310
      %s312 = sphi 0, %s310
      %s313 = sphi 0, %s312
      %s327 = sphi 0, %s313
      %s331 = sphi 0, %s331
      %s333 = sphi 0, %s331
      %s334 = sphi 0, %s333
      %s348 = sphi 0, %s334
      %s352 = sphi 0, %s352
      %s354 = sphi 0, %s352
      %s355 = sphi 0, %s354
      %s369 = sphi 0, %s355
      %s373 = sphi 0, %s373
      %s375 = sphi 0, %s373
      %s376 = sphi 0, %s375
      %s390 = sphi 0, %s376
      %s394 = sphi 0, %s394
      %s396 = sphi 0, %s394
      %s397 = sphi 0, %s396
      %s411 = sphi 0, %s397
      %s417 = sphi 0, %s419
      %s420 = sphi 0, %s417
      %s421 = sphi 0, %s420
      %s437 = sphi 0, %s421
      %s443 = sphi 0, %s445
      %s446 = sphi 0, %s443
      %s447 = sphi 0, %s446
      %s463 = sphi 0, %s447
    $region4: #{_decoder_steps.1} parent=1 // loop_header_branch
      %43 = sbr.rel (%p41) target = $region8
    $region5: #{_decoder_steps.1} parent=1 // loop_body
      %s45 = ssub.s32 %s40, 1
      %s46 = ssub.s32 %s40, 2
      %s47 = sadd.s32 %s40, 1
      %s48 = ssub.s32 %s40, %s47
      %p49 = scmp.eq.s32.totalorder %s48, 0
      %s51 = sadd.s32 %s50, 1
      %s52 = scalar_select %p49, %s50, %s51
      %p55 = pneg %p49
      %p56 = scmp.eq.s32.totalorder %s40, 8
      %p57 = por %p55, %p56
      %p58 = scmp.ne.s32.totalorder %s50, %s53
      %p59 = scmp.eq.s32.totalorder %s40, 0
      %p60 = por %p58, %p59
      %p61 = scmp.ne.s32.totalorder %s50, %s53
      %p62 = scmp.eq.s32.totalorder %s45, 8
      %p63 = por %p61, %p62
      %p64 = scmp.ne.s32.totalorder %s53, %s54
      %p65 = scmp.eq.s32.totalorder %s45, 0
      %p66 = por %p64, %p65
      %p67 = scmp.ne.s32.totalorder %s53, %s54
      %p68 = scmp.eq.s32.totalorder %s46, 8
      %p69 = por %p67, %p68
      %p71 = scmp.ne.s32.totalorder %s54, %s70
      %p72 = scmp.eq.s32.totalorder %s46, 0
      %p73 = por %p71, %p72
      %s74 = ssub.s32 %s40, %s47
      %p75 = scmp.eq.s32.totalorder %s74, 0
      %s77 = sadd.s32 %s76, 1
      %s78 = scalar_select %p75, %s76, %s77
      %p81 = pneg %p75
      %p82 = scmp.eq.s32.totalorder %s40, 8
      %p83 = por %p81, %p82
      %p84 = scmp.ne.s32.totalorder %s76, %s79
      %p85 = scmp.eq.s32.totalorder %s40, 0
      %p86 = por %p84, %p85
      %p87 = scmp.ne.s32.totalorder %s76, %s79
      %p88 = scmp.eq.s32.totalorder %s45, 8
      %p89 = por %p87, %p88
      %p90 = scmp.ne.s32.totalorder %s79, %s80
      %p91 = scmp.eq.s32.totalorder %s45, 0
      %p92 = por %p90, %p91
      %p93 = scmp.ne.s32.totalorder %s79, %s80
      %p94 = scmp.eq.s32.totalorder %s46, 8
      %p95 = por %p93, %p94
      %p97 = scmp.ne.s32.totalorder %s80, %s96
      %p98 = scmp.eq.s32.totalorder %s46, 0
      %p99 = por %p97, %p98
      %s101 = sadd.s32 %s100, 1
      %p104 = scmp.eq.s32.totalorder %s40, 8
      %p105 = scmp.ne.s32.totalorder %s100, %s102
      %p106 = scmp.eq.s32.totalorder %s40, 0
      %p107 = por %p105, %p106
      %p108 = scmp.ne.s32.totalorder %s100, %s102
      %p109 = scmp.eq.s32.totalorder %s45, 8
      %p110 = por %p108, %p109
      %p111 = scmp.ne.s32.totalorder %s102, %s103
      %p112 = scmp.eq.s32.totalorder %s45, 0
      %p113 = por %p111, %p112
      %p114 = scmp.ne.s32.totalorder %s102, %s103
      %p115 = scmp.eq.s32.totalorder %s46, 8
      %p116 = por %p114, %p115
      %p118 = scmp.ne.s32.totalorder %s103, %s117
      %p119 = scmp.eq.s32.totalorder %s46, 0
      %p120 = por %p118, %p119
      %s122 = sadd.s32 %s121, 1
      %p125 = scmp.eq.s32.totalorder %s40, 8
      %p126 = scmp.ne.s32.totalorder %s121, %s123
      %p127 = scmp.eq.s32.totalorder %s40, 0
      %p128 = por %p126, %p127
      %p129 = scmp.ne.s32.totalorder %s121, %s123
      %p130 = scmp.eq.s32.totalorder %s45, 8
      %p131 = por %p129, %p130
      %p132 = scmp.ne.s32.totalorder %s123, %s124
      %p133 = scmp.eq.s32.totalorder %s45, 0
      %p134 = por %p132, %p133
      %p135 = scmp.ne.s32.totalorder %s123, %s124
      %p136 = scmp.eq.s32.totalorder %s46, 8
      %p137 = por %p135, %p136
      %p139 = scmp.ne.s32.totalorder %s124, %s138
      %p140 = scmp.eq.s32.totalorder %s46, 0
      %p141 = por %p139, %p140
      %s143 = sadd.s32 %s142, 1
      %p146 = scmp.eq.s32.totalorder %s40, 8
      %p147 = scmp.ne.s32.totalorder %s142, %s144
      %p148 = scmp.eq.s32.totalorder %s40, 0
      %p149 = por %p147, %p148
      %p150 = scmp.ne.s32.totalorder %s142, %s144
      %p151 = scmp.eq.s32.totalorder %s45, 8
      %p152 = por %p150, %p151
      %p153 = scmp.ne.s32.totalorder %s144, %s145
      %p154 = scmp.eq.s32.totalorder %s45, 0
      %p155 = por %p153, %p154
      %p156 = scmp.ne.s32.totalorder %s144, %s145
      %p157 = scmp.eq.s32.totalorder %s46, 8
      %p158 = por %p156, %p157
      %p160 = scmp.ne.s32.totalorder %s145, %s159
      %p161 = scmp.eq.s32.totalorder %s46, 0
      %p162 = por %p160, %p161
      %s164 = sadd.s32 %s163, 1
      %p167 = scmp.eq.s32.totalorder %s40, 8
      %p168 = scmp.ne.s32.totalorder %s163, %s165
      %p169 = scmp.eq.s32.totalorder %s40, 0
      %p170 = por %p168, %p169
      %p171 = scmp.ne.s32.totalorder %s163, %s165
      %p172 = scmp.eq.s32.totalorder %s45, 8
      %p173 = por %p171, %p172
      %p174 = scmp.ne.s32.totalorder %s165, %s166
      %p175 = scmp.eq.s32.totalorder %s45, 0
      %p176 = por %p174, %p175
      %p177 = scmp.ne.s32.totalorder %s165, %s166
      %p178 = scmp.eq.s32.totalorder %s46, 8
      %p179 = por %p177, %p178
      %p181 = scmp.ne.s32.totalorder %s166, %s180
      %p182 = scmp.eq.s32.totalorder %s46, 0
      %p183 = por %p181, %p182
      %s185 = sadd.s32 %s184, 1
      %p188 = scmp.eq.s32.totalorder %s40, 8
      %p189 = scmp.ne.s32.totalorder %s184, %s186
      %p190 = scmp.eq.s32.totalorder %s40, 0
      %p191 = por %p189, %p190
      %p192 = scmp.ne.s32.totalorder %s184, %s186
      %p193 = scmp.eq.s32.totalorder %s45, 8
      %p194 = por %p192, %p193
      %p195 = scmp.ne.s32.totalorder %s186, %s187
      %p196 = scmp.eq.s32.totalorder %s45, 0
      %p197 = por %p195, %p196
      %p198 = scmp.ne.s32.totalorder %s186, %s187
      %p199 = scmp.eq.s32.totalorder %s46, 8
      %p200 = por %p198, %p199
      %p202 = scmp.ne.s32.totalorder %s187, %s201
      %p203 = scmp.eq.s32.totalorder %s46, 0
      %p204 = por %p202, %p203
      %s206 = sadd.s32 %s205, 1
      %p209 = scmp.eq.s32.totalorder %s40, 8
      %p210 = scmp.ne.s32.totalorder %s205, %s207
      %p211 = scmp.eq.s32.totalorder %s40, 0
      %p212 = por %p210, %p211
      %p213 = scmp.ne.s32.totalorder %s205, %s207
      %p214 = scmp.eq.s32.totalorder %s45, 8
      %p215 = por %p213, %p214
      %p216 = scmp.ne.s32.totalorder %s207, %s208
      %p217 = scmp.eq.s32.totalorder %s45, 0
      %p218 = por %p216, %p217
      %p219 = scmp.ne.s32.totalorder %s207, %s208
      %p220 = scmp.eq.s32.totalorder %s46, 8
      %p221 = por %p219, %p220
      %p223 = scmp.ne.s32.totalorder %s208, %s222
      %p224 = scmp.eq.s32.totalorder %s46, 0
      %p225 = por %p223, %p224
      %s227 = sadd.s32 %s226, 1
      %p230 = scmp.eq.s32.totalorder %s40, 8
      %p231 = scmp.ne.s32.totalorder %s226, %s228
      %p232 = scmp.eq.s32.totalorder %s40, 0
      %p233 = por %p231, %p232
      %p234 = scmp.ne.s32.totalorder %s226, %s228
      %p235 = scmp.eq.s32.totalorder %s45, 8
      %p236 = por %p234, %p235
      %p237 = scmp.ne.s32.totalorder %s228, %s229
      %p238 = scmp.eq.s32.totalorder %s45, 0
      %p239 = por %p237, %p238
      %p240 = scmp.ne.s32.totalorder %s228, %s229
      %p241 = scmp.eq.s32.totalorder %s46, 8
      %p242 = por %p240, %p241
      %p244 = scmp.ne.s32.totalorder %s229, %s243
      %p245 = scmp.eq.s32.totalorder %s46, 0
      %p246 = por %p244, %p245
      %s248 = sadd.s32 %s247, 1
      %p251 = scmp.eq.s32.totalorder %s40, 8
      %p252 = scmp.ne.s32.totalorder %s247, %s249
      %p253 = scmp.eq.s32.totalorder %s40, 0
      %p254 = por %p252, %p253
      %p255 = scmp.ne.s32.totalorder %s247, %s249
      %p256 = scmp.eq.s32.totalorder %s45, 8
      %p257 = por %p255, %p256
      %p258 = scmp.ne.s32.totalorder %s249, %s250
      %p259 = scmp.eq.s32.totalorder %s45, 0
      %p260 = por %p258, %p259
      %p261 = scmp.ne.s32.totalorder %s249, %s250
      %p262 = scmp.eq.s32.totalorder %s46, 8
      %p263 = por %p261, %p262
      %p265 = scmp.ne.s32.totalorder %s250, %s264
      %p266 = scmp.eq.s32.totalorder %s46, 0
      %p267 = por %p265, %p266
      %s269 = sadd.s32 %s268, 1
      %p272 = scmp.eq.s32.totalorder %s40, 8
      %p273 = scmp.ne.s32.totalorder %s268, %s270
      %p274 = scmp.eq.s32.totalorder %s40, 0
      %p275 = por %p273, %p274
      %p276 = scmp.ne.s32.totalorder %s268, %s270
      %p277 = scmp.eq.s32.totalorder %s45, 8
      %p278 = por %p276, %p277
      %p279 = scmp.ne.s32.totalorder %s270, %s271
      %p280 = scmp.eq.s32.totalorder %s45, 0
      %p281 = por %p279, %p280
      %p282 = scmp.ne.s32.totalorder %s270, %s271
      %p283 = scmp.eq.s32.totalorder %s46, 8
      %p284 = por %p282, %p283
      %p286 = scmp.ne.s32.totalorder %s271, %s285
      %p287 = scmp.eq.s32.totalorder %s46, 0
      %p288 = por %p286, %p287
      %s290 = sadd.s32 %s289, 1
      %p293 = scmp.eq.s32.totalorder %s40, 8
      %p294 = scmp.ne.s32.totalorder %s289, %s291
      %p295 = scmp.eq.s32.totalorder %s40, 0
      %p296 = por %p294, %p295
      %p297 = scmp.ne.s32.totalorder %s289, %s291
      %p298 = scmp.eq.s32.totalorder %s45, 8
      %p299 = por %p297, %p298
      %p300 = scmp.ne.s32.totalorder %s291, %s292
      %p301 = scmp.eq.s32.totalorder %s45, 0
      %p302 = por %p300, %p301
      %p303 = scmp.ne.s32.totalorder %s291, %s292
      %p304 = scmp.eq.s32.totalorder %s46, 8
      %p305 = por %p303, %p304
      %p307 = scmp.ne.s32.totalorder %s292, %s306
      %p308 = scmp.eq.s32.totalorder %s46, 0
      %p309 = por %p307, %p308
      %s311 = sadd.s32 %s310, 1
      %p314 = scmp.eq.s32.totalorder %s40, 8
      %p315 = scmp.ne.s32.totalorder %s310, %s312
      %p316 = scmp.eq.s32.totalorder %s40, 0
      %p317 = por %p315, %p316
      %p318 = scmp.ne.s32.totalorder %s310, %s312
      %p319 = scmp.eq.s32.totalorder %s45, 8
      %p320 = por %p318, %p319
      %p321 = scmp.ne.s32.totalorder %s312, %s313
      %p322 = scmp.eq.s32.totalorder %s45, 0
      %p323 = por %p321, %p322
      %p324 = scmp.ne.s32.totalorder %s312, %s313
      %p325 = scmp.eq.s32.totalorder %s46, 8
      %p326 = por %p324, %p325
      %p328 = scmp.ne.s32.totalorder %s313, %s327
      %p329 = scmp.eq.s32.totalorder %s46, 0
      %p330 = por %p328, %p329
      %s332 = sadd.s32 %s331, 1
      %p335 = scmp.eq.s32.totalorder %s40, 8
      %p336 = scmp.ne.s32.totalorder %s331, %s333
      %p337 = scmp.eq.s32.totalorder %s40, 0
      %p338 = por %p336, %p337
      %p339 = scmp.ne.s32.totalorder %s331, %s333
      %p340 = scmp.eq.s32.totalorder %s45, 8
      %p341 = por %p339, %p340
      %p342 = scmp.ne.s32.totalorder %s333, %s334
      %p343 = scmp.eq.s32.totalorder %s45, 0
      %p344 = por %p342, %p343
      %p345 = scmp.ne.s32.totalorder %s333, %s334
      %p346 = scmp.eq.s32.totalorder %s46, 8
      %p347 = por %p345, %p346
      %p349 = scmp.ne.s32.totalorder %s334, %s348
      %p350 = scmp.eq.s32.totalorder %s46, 0
      %p351 = por %p349, %p350
      %s353 = sadd.s32 %s352, 1
      %p356 = scmp.eq.s32.totalorder %s40, 8
      %p357 = scmp.ne.s32.totalorder %s352, %s354
      %p358 = scmp.eq.s32.totalorder %s40, 0
      %p359 = por %p357, %p358
      %p360 = scmp.ne.s32.totalorder %s352, %s354
      %p361 = scmp.eq.s32.totalorder %s45, 8
      %p362 = por %p360, %p361
      %p363 = scmp.ne.s32.totalorder %s354, %s355
      %p364 = scmp.eq.s32.totalorder %s45, 0
      %p365 = por %p363, %p364
      %p366 = scmp.ne.s32.totalorder %s354, %s355
      %p367 = scmp.eq.s32.totalorder %s46, 8
      %p368 = por %p366, %p367
      %p370 = scmp.ne.s32.totalorder %s355, %s369
      %p371 = scmp.eq.s32.totalorder %s46, 0
      %p372 = por %p370, %p371
      %s374 = sadd.s32 %s373, 1
      %p377 = scmp.eq.s32.totalorder %s40, 8
      %p378 = scmp.ne.s32.totalorder %s373, %s375
      %p379 = scmp.eq.s32.totalorder %s40, 0
      %p380 = por %p378, %p379
      %p381 = scmp.ne.s32.totalorder %s373, %s375
      %p382 = scmp.eq.s32.totalorder %s45, 8
      %p383 = por %p381, %p382
      %p384 = scmp.ne.s32.totalorder %s375, %s376
      %p385 = scmp.eq.s32.totalorder %s45, 0
      %p386 = por %p384, %p385
      %p387 = scmp.ne.s32.totalorder %s375, %s376
      %p388 = scmp.eq.s32.totalorder %s46, 8
      %p389 = por %p387, %p388
      %p391 = scmp.ne.s32.totalorder %s376, %s390
      %p392 = scmp.eq.s32.totalorder %s46, 0
      %p393 = por %p391, %p392
      %s395 = sadd.s32 %s394, 1
      %p398 = scmp.eq.s32.totalorder %s40, 8
      %p399 = scmp.ne.s32.totalorder %s394, %s396
      %p400 = scmp.eq.s32.totalorder %s40, 0
      %p401 = por %p399, %p400
      %p402 = scmp.ne.s32.totalorder %s394, %s396
      %p403 = scmp.eq.s32.totalorder %s45, 8
      %p404 = por %p402, %p403
      %p405 = scmp.ne.s32.totalorder %s396, %s397
      %p406 = scmp.eq.s32.totalorder %s45, 0
      %p407 = por %p405, %p406
      %p408 = scmp.ne.s32.totalorder %s396, %s397
      %p409 = scmp.eq.s32.totalorder %s46, 8
      %p410 = por %p408, %p409
      %p412 = scmp.ne.s32.totalorder %s397, %s411
      %p413 = scmp.eq.s32.totalorder %s46, 0
      %p414 = por %p412, %p413
      %s415 = ssub.s32 %s40, %s47
      %p416 = scmp.eq.s32.totalorder %s415, 0
      %s418 = sadd.s32 %s417, 1
      %s419 = scalar_select %p416, %s417, %s418
      %p422 = pneg %p416
      %p423 = scmp.eq.s32.totalorder %s40, 8
      %p424 = por %p422, %p423
      %p425 = scmp.ne.s32.totalorder %s417, %s420
      %p426 = scmp.eq.s32.totalorder %s40, 0
      %p427 = por %p425, %p426
      %p428 = scmp.ne.s32.totalorder %s417, %s420
      %p429 = scmp.eq.s32.totalorder %s45, 8
      %p430 = por %p428, %p429
      %p431 = scmp.ne.s32.totalorder %s420, %s421
      %p432 = scmp.eq.s32.totalorder %s45, 0
      %p433 = por %p431, %p432
      %p434 = scmp.ne.s32.totalorder %s420, %s421
      %p435 = scmp.eq.s32.totalorder %s46, 8
      %p436 = por %p434, %p435
      %p438 = scmp.ne.s32.totalorder %s421, %s437
      %p439 = scmp.eq.s32.totalorder %s46, 0
      %p440 = por %p438, %p439
      %s441 = ssub.s32 %s40, %s47
      %p442 = scmp.eq.s32.totalorder %s441, 0
      %s444 = sadd.s32 %s443, 1
      %s445 = scalar_select %p442, %s443, %s444
      %p448 = pneg %p442
      %p449 = scmp.eq.s32.totalorder %s40, 8
      %p450 = por %p448, %p449
      %p451 = scmp.ne.s32.totalorder %s443, %s446
      %p452 = scmp.eq.s32.totalorder %s40, 0
      %p453 = por %p451, %p452
      %p454 = scmp.ne.s32.totalorder %s443, %s446
      %p455 = scmp.eq.s32.totalorder %s45, 8
      %p456 = por %p454, %p455
      %p457 = scmp.ne.s32.totalorder %s446, %s447
      %p458 = scmp.eq.s32.totalorder %s45, 0
      %p459 = por %p457, %p458
      %p460 = scmp.ne.s32.totalorder %s446, %s447
      %p461 = scmp.eq.s32.totalorder %s46, 8
      %p462 = por %p460, %p461
      %p464 = scmp.ne.s32.totalorder %s447, %s463
      %p465 = scmp.eq.s32.totalorder %s46, 0
      %p466 = por %p464, %p465
      %p467 = scmp.le.s32.totalorder 1, %s40
      %p468 = scmp.lt.s32.totalorder %s40, 10
      %p469 = pnand %p467, %p468
      %p470 = pneg %p469
      // Predicated region
      $region9: #{_decoder_steps.1} parent=5 // pred_check
        _
      $region10: #{_decoder_steps.1} parent=5 // pred_check_branch
        %472 = sbr.rel (%p469) target = $region12
      $region11: #{_decoder_steps.1} parent=5 // pred_region
        %s473 = ssub.s32 %s40, 1
        // Predicated region
        $region13: #{_decoder_steps.1} parent=11 // pred_check
          %p474 = pneg %p113
        $region14: #{_decoder_steps.1} parent=11 // pred_check_branch
          %476 = sbr.rel (%p474) target = $region16
        $region15: #{_decoder_steps.1} parent=11 // pred_region
          _
        $region16: #{_decoder_steps.1} parent=11 // pred_fallthru
          _
        // Predicated region
        $region17: #{_decoder_steps.1} parent=11 // pred_check
          %p477 = pneg %p134
        $region18: #{_decoder_steps.1} parent=11 // pred_check_branch
          %479 = sbr.rel (%p477) target = $region20
        $region19: #{_decoder_steps.1} parent=11 // pred_region
          %481 = vsyncadd [#allocation6], 0
          %s482 = sshll.u32 %s3, 4
          %s483 = int_to_ptr.hbm [resolvable:$true] %s482
          %s484 = sshll.u32 [#allocation5], 4
          %s485 = int_to_ptr.vmem [resolvable:$true] %s484
          %490 = dma.hbm_to_vmem [thread:$0]  %s483, 2048, %s485, [#allocation6], 128, 128, 8
        $region20: #{_decoder_steps.1} parent=11 // pred_fallthru
          _
        // Predicated region
        $region21: #{_decoder_steps.1} parent=11 // pred_check
          %p491 = pneg %p155
        $region22: #{_decoder_steps.1} parent=11 // pred_check_branch
          %493 = sbr.rel (%p491) target = $region24
        $region23: #{_decoder_steps.1} parent=11 // pred_region
          %495 = vsyncadd [#allocation6], 0
          %s496 = sshll.u32 %s4, 4
          %s497 = int_to_ptr.hbm [resolvable:$true] %s496
          %s498 = sshll.u32 [#allocation7], 4
          %s499 = int_to_ptr.vmem [resolvable:$true] %s498
          %504 = dma.hbm_to_vmem [thread:$0]  %s497, 2048, %s499, [#allocation6], 128, 128, 8
        $region24: #{_decoder_steps.1} parent=11 // pred_fallthru
          _
        // Predicated region
        $region25: #{_decoder_steps.1} parent=11 // pred_check
          %p505 = pneg %p176
        $region26: #{_decoder_steps.1} parent=11 // pred_check_branch
          %507 = sbr.rel (%p505) target = $region28
        $region27: #{_decoder_steps.1} parent=11 // pred_region
          %509 = vsyncadd [#allocation9], 0
          %s510 = sshll.u32 %s5, 4
          %s511 = int_to_ptr.hbm [resolvable:$true] %s510
          %s512 = sshll.u32 [#allocation8], 4
          %s513 = int_to_ptr.vmem [resolvable:$true] %s512
          %518 = dma.hbm_to_vmem [thread:$0]  %s511, 2048, %s513, [#allocation9], 128, 128, 8
        $region28: #{_decoder_steps.1} parent=11 // pred_fallthru
          _
        // Predicated region
        $region29: #{_decoder_steps.1} parent=11 // pred_check
          %p519 = pneg %p197
        $region30: #{_decoder_steps.1} parent=11 // pred_check_branch
          %521 = sbr.rel (%p519) target = $region32
        $region31: #{_decoder_steps.1} parent=11 // pred_region
          %523 = vsyncadd [#allocation9], 0
          %s524 = sshll.u32 %s6, 4
          %s525 = int_to_ptr.hbm [resolvable:$true] %s524
          %s526 = sshll.u32 [#allocation10], 4
          %s527 = int_to_ptr.vmem [resolvable:$true] %s526
          %532 = dma.hbm_to_vmem [thread:$0]  %s525, 2048, %s527, [#allocation9], 128, 128, 8
        $region32: #{_decoder_steps.1} parent=11 // pred_fallthru
          _
        // Predicated region
        $region33: #{_decoder_steps.1} parent=11 // pred_check
          %p533 = pneg %p218
        $region34: #{_decoder_steps.1} parent=11 // pred_check_branch
          %535 = sbr.rel (%p533) target = $region36
        $region35: #{_decoder_steps.1} parent=11 // pred_region
          %537 = vsyncadd [#allocation12], 0
          %s538 = sshll.u32 %s7, 4
          %s539 = int_to_ptr.hbm [resolvable:$true] %s538
          %s540 = sshll.u32 [#allocation11], 4
          %s541 = int_to_ptr.vmem [resolvable:$true] %s540
          %546 = dma.hbm_to_vmem [thread:$0]  %s539, 2048, %s541, [#allocation12], 128, 128, 8
        $region36: #{_decoder_steps.1} parent=11 // pred_fallthru
          _
        // Predicated region
        $region37: #{_decoder_steps.1} parent=11 // pred_check
          %p547 = pneg %p239
        $region38: #{_decoder_steps.1} parent=11 // pred_check_branch
          %549 = sbr.rel (%p547) target = $region40
        $region39: #{_decoder_steps.1} parent=11 // pred_region
          %551 = vsyncadd [#allocation12], 0
          %s552 = sshll.u32 %s8, 4
          %s553 = int_to_ptr.hbm [resolvable:$true] %s552
          %s554 = sshll.u32 [#allocation13], 4
          %s555 = int_to_ptr.vmem [resolvable:$true] %s554
          %560 = dma.hbm_to_vmem [thread:$0]  %s553, 256, %s555, [#allocation12], 128, 128, 8
        $region40: #{_decoder_steps.1} parent=11 // pred_fallthru
          _
        // Predicated region
        $region41: #{_decoder_steps.1} parent=11 // pred_check
          %p561 = pneg %p260
        $region42: #{_decoder_steps.1} parent=11 // pred_check_branch
          %563 = sbr.rel (%p561) target = $region44
        $region43: #{_decoder_steps.1} parent=11 // pred_region
          %565 = vsyncadd [#allocation15], 0
          %s566 = sshll.u32 %s9, 4
          %s567 = int_to_ptr.hbm [resolvable:$true] %s566
          %s568 = sshll.u32 [#allocation14], 4
          %s569 = int_to_ptr.vmem [resolvable:$true] %s568
          %574 = dma.hbm_to_vmem [thread:$0]  %s567, 256, %s569, [#allocation15], 128, 128, 8
        $region44: #{_decoder_steps.1} parent=11 // pred_fallthru
          _
        // Predicated region
        $region45: #{_decoder_steps.1} parent=11 // pred_check
          %p575 = pneg %p281
        $region46: #{_decoder_steps.1} parent=11 // pred_check_branch
          %577 = sbr.rel (%p575) target = $region48
        $region47: #{_decoder_steps.1} parent=11 // pred_region
          %579 = vsyncadd [#allocation15], 0
          %s580 = sshll.u32 %s10, 4
          %s581 = int_to_ptr.hbm [resolvable:$true] %s580
          %s582 = sshll.u32 [#allocation16], 4
          %s583 = int_to_ptr.vmem [resolvable:$true] %s582
          %588 = dma.hbm_to_vmem [thread:$0]  %s581, 2048, %s583, [#allocation15], 128, 128, 8
        $region48: #{_decoder_steps.1} parent=11 // pred_fallthru
          _
        // Predicated region
        $region49: #{_decoder_steps.1} parent=11 // pred_check
          %p589 = pneg %p302
        $region50: #{_decoder_steps.1} parent=11 // pred_check_branch
          %591 = sbr.rel (%p589) target = $region52
        $region51: #{_decoder_steps.1} parent=11 // pred_region
          %593 = vsyncadd [#allocation18], 0
          %s594 = sshll.u32 %s11, 4
          %s595 = int_to_ptr.hbm [resolvable:$true] %s594
          %s596 = sshll.u32 [#allocation17], 4
          %s597 = int_to_ptr.vmem [resolvable:$true] %s596
          %602 = dma.hbm_to_vmem [thread:$0]  %s595, 2048, %s597, [#allocation18], 128, 128, 8
        $region52: #{_decoder_steps.1} parent=11 // pred_fallthru
          _
        // Predicated region
        $region53: #{_decoder_steps.1} parent=11 // pred_check
          %p603 = pneg %p323
        $region54: #{_decoder_steps.1} parent=11 // pred_check_branch
          %605 = sbr.rel (%p603) target = $region56
        $region55: #{_decoder_steps.1} parent=11 // pred_region
          _
        $region56: #{_decoder_steps.1} parent=11 // pred_fallthru
          _
        // Predicated region
        $region57: #{_decoder_steps.1} parent=11 // pred_check
          %p606 = pneg %p344
        $region58: #{_decoder_steps.1} parent=11 // pred_check_branch
          %608 = sbr.rel (%p606) target = $region60
        $region59: #{_decoder_steps.1} parent=11 // pred_region
          %610 = vsyncadd [#allocation18], 0
          %s611 = sshll.u32 %s13, 4
          %s612 = int_to_ptr.hbm [resolvable:$true] %s611
          %s613 = sshll.u32 [#allocation19], 4
          %s614 = int_to_ptr.vmem [resolvable:$true] %s613
          %619 = dma.hbm_to_vmem [thread:$0]  %s612, 4096, %s614, [#allocation18], 256, 256, 16
        $region60: #{_decoder_steps.1} parent=11 // pred_fallthru
          _
        // Predicated region
        $region61: #{_decoder_steps.1} parent=11 // pred_check
          %p620 = pneg %p365
        $region62: #{_decoder_steps.1} parent=11 // pred_check_branch
          %622 = sbr.rel (%p620) target = $region64
        $region63: #{_decoder_steps.1} parent=11 // pred_region
          _
        $region64: #{_decoder_steps.1} parent=11 // pred_fallthru
          _
        // Predicated region
        $region65: #{_decoder_steps.1} parent=11 // pred_check
          %p623 = pneg %p386
        $region66: #{_decoder_steps.1} parent=11 // pred_check_branch
          %625 = sbr.rel (%p623) target = $region68
        $region67: #{_decoder_steps.1} parent=11 // pred_region
          %627 = vsyncadd [#allocation21], 0
          %s628 = sshll.u32 %s15, 4
          %s629 = int_to_ptr.hbm [resolvable:$true] %s628
          %s630 = sshll.u32 [#allocation20], 4
          %s631 = int_to_ptr.vmem [resolvable:$true] %s630
          %636 = dma.hbm_to_vmem [thread:$0]  %s629, 4096, %s631, [#allocation21], 128, 128, 8
        $region68: #{_decoder_steps.1} parent=11 // pred_fallthru
          _
        // Predicated region
        $region69: #{_decoder_steps.1} parent=11 // pred_check
          %p637 = pneg %p407
        $region70: #{_decoder_steps.1} parent=11 // pred_check_branch
          %639 = sbr.rel (%p637) target = $region72
        $region71: #{_decoder_steps.1} parent=11 // pred_region
          _
        $region72: #{_decoder_steps.1} parent=11 // pred_fallthru
          _
      $region12: #{_decoder_steps.1} parent=5 // pred_fallthru
        _
      %p640 = scmp.lt.s32.totalorder %s40, 9
      // Predicated region
      $region73: #{_decoder_steps.1} parent=5 // pred_check
        %p641 = pneg %p640
      $region74: #{_decoder_steps.1} parent=5 // pred_check_branch
        %643 = sbr.rel (%p641) target = $region76
      $region75: #{_decoder_steps.1} parent=5 // pred_region
        // Predicated region
        $region77: #{_decoder_steps.1} parent=75 // pred_check
          %p644 = pneg %p60
        $region78: #{_decoder_steps.1} parent=75 // pred_check_branch
          %646 = sbr.rel (%p644) target = $region80
        $region79: #{_decoder_steps.1} parent=75 // pred_region
          %s647 = sand.u32 %s50, 1
          %s648 = scalar_lea.sflag [#allocation3], %s647
          %s649 = sand.u32 %s50, 1
          %s650 = smul.addr %s649, 2
          %s651 = scalar_lea.vmem [#allocation2], %s650
          %653 = vsyncadd %s648, 0
          %s654 = smul.addr %s40, 2
          %s655 = scalar_lea.hbm %s0, %s654
          %s657 = sshll.u32 %s655, 4
          %s658 = int_to_ptr.hbm [resolvable:$true] %s657
          %s659 = sshll.u32 %s651, 4
          %s660 = int_to_ptr.vmem [resolvable:$true] %s659
          %662 = dma.hbm_to_vmem [thread:$0]  %s658, 32, %s660, %s648
        $region80: #{_decoder_steps.1} parent=75 // pred_fallthru
          _
        // Predicated region
        $region81: #{_decoder_steps.1} parent=75 // pred_check
          %p663 = pneg %p86
        $region82: #{_decoder_steps.1} parent=75 // pred_check_branch
          %665 = sbr.rel (%p663) target = $region84
        $region83: #{_decoder_steps.1} parent=75 // pred_region
          %p666 = scmp.lt.s32.totalorder %s40, 8
          %s667 = scalar_select %p666, %s40, 8
          %s668 = smul.addr %s667, 4
          %s669 = smul.addr %s668, 2
          %s670 = scalar_lea.vmem %s1, %s669
        $region84: #{_decoder_steps.1} parent=75 // pred_fallthru
          _
      $region76: #{_decoder_steps.1} parent=5 // pred_fallthru
        _
      %p671 = scmp.le.s32.totalorder 1, %s40
      %p672 = scmp.lt.s32.totalorder %s40, 10
      %p673 = pnand %p671, %p672
      %p674 = pneg %p673
      // Predicated region
      $region85: #{_decoder_steps.1} parent=5 // pred_check
        _
      $region86: #{_decoder_steps.1} parent=5 // pred_check_branch
        %676 = sbr.rel (%p673) target = $region88
      $region87: #{_decoder_steps.1} parent=5 // pred_region
        %s677 = ssub.s32 %s40, 1
        %s678 = sand.u32 %s53, 1
        %s679 = scalar_lea.sflag [#allocation3], %s678
        %s680 = sand.u32 %s53, 1
        %s681 = smul.addr %s680, 2
        %s682 = scalar_lea.vmem [#allocation2], %s681
        // Predicated region
        $region89: #{_decoder_steps.1} parent=87 // pred_check
          %p683 = pneg %p66
        $region90: #{_decoder_steps.1} parent=87 // pred_check_branch
          %685 = sbr.rel (%p683) target = $region92
        $region91: #{_decoder_steps.1} parent=87 // pred_region
          %687 = dma.done %s679, 32
        $region92: #{_decoder_steps.1} parent=87 // pred_fallthru
          _
        // Predicated region
        $region93: #{_decoder_steps.1} parent=87 // pred_check
          %p688 = pneg %p134
        $region94: #{_decoder_steps.1} parent=87 // pred_check_branch
          %690 = sbr.rel (%p688) target = $region96
        $region95: #{_decoder_steps.1} parent=87 // pred_region
          %692 = dma.done [#allocation6], 2048
        $region96: #{_decoder_steps.1} parent=87 // pred_fallthru
          _
        // Predicated region
        $region97: #{_decoder_steps.1} parent=87 // pred_check
          %p693 = pneg %p155
        $region98: #{_decoder_steps.1} parent=87 // pred_check_branch
          %695 = sbr.rel (%p693) target = $region100
        $region99: #{_decoder_steps.1} parent=87 // pred_region
          %697 = dma.done [#allocation6], 2048
        $region100: #{_decoder_steps.1} parent=87 // pred_fallthru
          _
        // Predicated region
        $region101: #{_decoder_steps.1} parent=87 // pred_check
          %p698 = pneg %p176
        $region102: #{_decoder_steps.1} parent=87 // pred_check_branch
          %700 = sbr.rel (%p698) target = $region104
        $region103: #{_decoder_steps.1} parent=87 // pred_region
          %702 = dma.done [#allocation9], 2048
        $region104: #{_decoder_steps.1} parent=87 // pred_fallthru
          _
        // Predicated region
        $region105: #{_decoder_steps.1} parent=87 // pred_check
          %p703 = pneg %p197
        $region106: #{_decoder_steps.1} parent=87 // pred_check_branch
          %705 = sbr.rel (%p703) target = $region108
        $region107: #{_decoder_steps.1} parent=87 // pred_region
          %707 = dma.done [#allocation9], 2048
        $region108: #{_decoder_steps.1} parent=87 // pred_fallthru
          _
        // Predicated region
        $region109: #{_decoder_steps.1} parent=87 // pred_check
          %p708 = pneg %p218
        $region110: #{_decoder_steps.1} parent=87 // pred_check_branch
          %710 = sbr.rel (%p708) target = $region112
        $region111: #{_decoder_steps.1} parent=87 // pred_region
          %712 = dma.done [#allocation12], 2048
        $region112: #{_decoder_steps.1} parent=87 // pred_fallthru
          _
        // Predicated region
        $region113: #{_decoder_steps.1} parent=87 // pred_check
          %p713 = pneg %p239
        $region114: #{_decoder_steps.1} parent=87 // pred_check_branch
          %715 = sbr.rel (%p713) target = $region116
        $region115: #{_decoder_steps.1} parent=87 // pred_region
          %717 = dma.done [#allocation12], 256
        $region116: #{_decoder_steps.1} parent=87 // pred_fallthru
          _
        // Predicated region
        $region117: #{_decoder_steps.1} parent=87 // pred_check
          %p718 = pneg %p260
        $region118: #{_decoder_steps.1} parent=87 // pred_check_branch
          %720 = sbr.rel (%p718) target = $region120
        $region119: #{_decoder_steps.1} parent=87 // pred_region
          %722 = dma.done [#allocation15], 256
        $region120: #{_decoder_steps.1} parent=87 // pred_fallthru
          _
        // Predicated region
        $region121: #{_decoder_steps.1} parent=87 // pred_check
          %p723 = pneg %p281
        $region122: #{_decoder_steps.1} parent=87 // pred_check_branch
          %725 = sbr.rel (%p723) target = $region124
        $region123: #{_decoder_steps.1} parent=87 // pred_region
          %727 = dma.done [#allocation15], 2048
        $region124: #{_decoder_steps.1} parent=87 // pred_fallthru
          _
        // Predicated region
        $region125: #{_decoder_steps.1} parent=87 // pred_check
          %p728 = pneg %p302
        $region126: #{_decoder_steps.1} parent=87 // pred_check_branch
          %730 = sbr.rel (%p728) target = $region128
        $region127: #{_decoder_steps.1} parent=87 // pred_region
          %732 = dma.done [#allocation18], 2048
        $region128: #{_decoder_steps.1} parent=87 // pred_fallthru
          _
        // Predicated region
        $region129: #{_decoder_steps.1} parent=87 // pred_check
          %p733 = pneg %p344
        $region130: #{_decoder_steps.1} parent=87 // pred_check_branch
          %735 = sbr.rel (%p733) target = $region132
        $region131: #{_decoder_steps.1} parent=87 // pred_region
          %737 = dma.done [#allocation18], 4096
        $region132: #{_decoder_steps.1} parent=87 // pred_fallthru
          _
        // Predicated region
        $region133: #{_decoder_steps.1} parent=87 // pred_check
          %p738 = pneg %p386
        $region134: #{_decoder_steps.1} parent=87 // pred_check_branch
          %740 = sbr.rel (%p738) target = $region136
        $region135: #{_decoder_steps.1} parent=87 // pred_region
          %742 = dma.done [#allocation21], 4096
        $region136: #{_decoder_steps.1} parent=87 // pred_fallthru
          _
        %s743 = sand.u32 %s53, 1
        %s744 = scalar_lea.sflag [#allocation3], %s743
        %s745 = sand.u32 %s53, 1
        %s746 = smul.addr %s745, 2
        %s747 = scalar_lea.vmem [#allocation2], %s746
        %p748 = pneg %p66
        %p749 = pneg %p63
        %p750 = scmp.lt.s32.totalorder %s45, 8
        %s751 = scalar_select %p750, %s45, 8
        %s752 = smul.addr %s751, 4
        %s753 = smul.addr %s752, 2
        %s754 = scalar_lea.vmem %s1, %s753
        %p755 = pneg %p92
        %p756 = pneg %p89
        %p757 = pneg %p113
        %p758 = pneg %p110
        %p759 = pneg %p134
        %p760 = pneg %p131
        %p761 = pneg %p155
        %p762 = pneg %p152
        %p763 = pneg %p176
        %p764 = pneg %p173
        %p765 = pneg %p197
        %p766 = pneg %p194
        %p767 = pneg %p218
        %p768 = pneg %p215
        %p769 = pneg %p239
        %p770 = pneg %p236
        %p771 = pneg %p260
        %p772 = pneg %p257
        %p773 = pneg %p281
        %p774 = pneg %p278
        %p775 = pneg %p302
        %p776 = pneg %p299
        %p777 = pneg %p323
        %p778 = pneg %p320
        %p779 = pneg %p344
        %p780 = pneg %p341
        %p781 = pneg %p365
        %p782 = pneg %p362
        %p783 = pneg %p386
        %p784 = pneg %p383
        %p785 = pneg %p407
        %p786 = pneg %p404
        %p787 = pneg %p433
        %p788 = pneg %p430
        %s789 = sand.u32 %s420, 1
        %s790 = scalar_lea.sflag [#allocation4], %s789
        %s791 = sand.u32 %s420, 1
        %s792 = smul.addr %s791, 2
        %s793 = scalar_lea.vmem [#allocation22], %s792
        %p794 = pneg %p459
        %p795 = pneg %p456
        %s796 = sand.u32 %s446, 1
        %s797 = scalar_lea.sflag [#allocation24], %s796
        %s798 = sand.u32 %s446, 1
        %s799 = smul.addr %s798, 2
        %s800 = scalar_lea.vmem [#allocation23], %s799
        %p801 = scmp.lt.s32.totalorder %s45, 8
        %s802 = scalar_select %p801, %s45, 8
        %s803 = smul.addr %s802, 4
        %s804 = smul.addr %s803, 2
        %s805 = scalar_lea.vmem %s1, %s804
        %v806 = vld [vmem:[%s682] sm:$0x3]
        %v807 = vld [vmem:[%s2] sm:$0xff]
        %v808 = vld [vmem:[%s2 + $0x8] sm:$0xff]
        %v809 = vld [vmem:[%s2 + $0x10] sm:$0xff]
        %v810 = vld [vmem:[%s2 + $0x18] sm:$0xff]
        %v811 = vld [vmem:[%s2 + $0x20] sm:$0xff]
        %v812 = vld [vmem:[%s2 + $0x28] sm:$0xff]
        %v813 = vld [vmem:[%s2 + $0x30] sm:$0xff]
        %v814 = vld [vmem:[%s2 + $0x38] sm:$0xff]
        %v815 = vld [vmem:[%s2 + $0x40] sm:$0xff]
        %v816 = vld [vmem:[%s2 + $0x48] sm:$0xff]
        %v817 = vld [vmem:[%s2 + $0x50] sm:$0xff]
        %v818 = vld [vmem:[%s2 + $0x58] sm:$0xff]
        %v819 = vld [vmem:[%s2 + $0x60] sm:$0xff]
        %v820 = vld [vmem:[%s2 + $0x68] sm:$0xff]
        %v821 = vld [vmem:[%s2 + $0x70] sm:$0xff]
        %v822 = vld [vmem:[%s2 + $0x78] sm:$0xff]
        %823 = vmatpush.msra.mxu0 %v822
        %824 = vmatpush.msra.mxu0 %v821
        %825 = vmatpush.msra.mxu0 %v820
        %826 = vmatpush.msra.mxu0 %v819
        %827 = vmatpush.msra.mxu0 %v818
        %828 = vmatpush.msra.mxu0 %v817
        %829 = vmatpush.msra.mxu0 %v816
        %830 = vmatpush.msra.mxu0 %v815
        %831 = vmatpush.msra.mxu0 %v814
        %832 = vmatpush.msra.mxu0 %v813
        %833 = vmatpush.msra.mxu0 %v812
        %834 = vmatpush.msra.mxu0 %v811
        %835 = vmatpush.msra.mxu0 %v810
        %836 = vmatpush.msra.mxu0 %v809
        %837 = vmatpush.msra.mxu0 %v808
        %838 = vmatpush.msra.mxu0 %v807
        %839 = vmatmul.f32.gmra.mxu0 %v806
        %v840 = vpop.f32.mrf.mxu0
        %v841 = vadd.f32 0.0, %v840
        %842 = vdwg.mxu0
        %v843 = vld [vmem:[#allocation7] sm:$0xff]
        %v844 = vld [vmem:[#allocation7 + $0x8] sm:$0xff]
        %v845 = vld [vmem:[#allocation7 + $0x10] sm:$0xff]
        %v846 = vld [vmem:[#allocation7 + $0x18] sm:$0xff]
        %v847 = vld [vmem:[#allocation7 + $0x20] sm:$0xff]
        %v848 = vld [vmem:[#allocation7 + $0x28] sm:$0xff]
        %v849 = vld [vmem:[#allocation7 + $0x30] sm:$0xff]
        %v850 = vld [vmem:[#allocation7 + $0x38] sm:$0xff]
        %v851 = vld [vmem:[#allocation7 + $0x40] sm:$0xff]
        %v852 = vld [vmem:[#allocation7 + $0x48] sm:$0xff]
        %v853 = vld [vmem:[#allocation7 + $0x50] sm:$0xff]
        %v854 = vld [vmem:[#allocation7 + $0x58] sm:$0xff]
        %v855 = vld [vmem:[#allocation7 + $0x60] sm:$0xff]
        %v856 = vld [vmem:[#allocation7 + $0x68] sm:$0xff]
        %v857 = vld [vmem:[#allocation7 + $0x70] sm:$0xff]
        %v858 = vld [vmem:[#allocation7 + $0x78] sm:$0xff]
        %v859 = vld [vmem:[#allocation8] sm:$0xff]
        %v860 = vld [vmem:[#allocation8 + $0x8] sm:$0xff]
        %v861 = vld [vmem:[#allocation8 + $0x10] sm:$0xff]
        %v862 = vld [vmem:[#allocation8 + $0x18] sm:$0xff]
        %v863 = vld [vmem:[#allocation8 + $0x20] sm:$0xff]
        %v864 = vld [vmem:[#allocation8 + $0x28] sm:$0xff]
        %v865 = vld [vmem:[#allocation8 + $0x30] sm:$0xff]
        %v866 = vld [vmem:[#allocation8 + $0x38] sm:$0xff]
        %v867 = vld [vmem:[#allocation8 + $0x40] sm:$0xff]
        %v868 = vld [vmem:[#allocation8 + $0x48] sm:$0xff]
        %v869 = vld [vmem:[#allocation8 + $0x50] sm:$0xff]
        %v870 = vld [vmem:[#allocation8 + $0x58] sm:$0xff]
        %v871 = vld [vmem:[#allocation8 + $0x60] sm:$0xff]
        %v872 = vld [vmem:[#allocation8 + $0x68] sm:$0xff]
        %v873 = vld [vmem:[#allocation8 + $0x70] sm:$0xff]
        %v874 = vld [vmem:[#allocation8 + $0x78] sm:$0xff]
        %875 = vmatpush.msra.mxu0 %v858
        %876 = vmatpush.msra.mxu0 %v857
        %877 = vmatpush.msra.mxu0 %v856
        %878 = vmatpush.msra.mxu0 %v855
        %879 = vmatpush.msra.mxu0 %v854
        %880 = vmatpush.msra.mxu0 %v853
        %881 = vmatpush.msra.mxu0 %v852
        %882 = vmatpush.msra.mxu0 %v851
        %883 = vmatpush.msra.mxu0 %v850
        %884 = vmatpush.msra.mxu0 %v849
        %885 = vmatpush.msra.mxu0 %v848
        %886 = vmatpush.msra.mxu0 %v847
        %887 = vmatpush.msra.mxu0 %v846
        %888 = vmatpush.msra.mxu0 %v845
        %889 = vmatpush.msra.mxu0 %v844
        %890 = vmatpush.msra.mxu0 %v843
        %891 = vmatmul.f32.gmra.mxu0 %v841
        %v892 = vpop.f32.mrf.mxu0
        %v893 = vadd.f32 0.0, %v892
        %894 = vdwg.mxu0
        %895 = vmatpush.msra.mxu0 %v874
        %896 = vmatpush.msra.mxu0 %v873
        %897 = vmatpush.msra.mxu0 %v872
        %898 = vmatpush.msra.mxu0 %v871
        %899 = vmatpush.msra.mxu0 %v870
        %900 = vmatpush.msra.mxu0 %v869
        %901 = vmatpush.msra.mxu0 %v868
        %902 = vmatpush.msra.mxu0 %v867
        %903 = vmatpush.msra.mxu0 %v866
        %904 = vmatpush.msra.mxu0 %v865
        %905 = vmatpush.msra.mxu0 %v864
        %906 = vmatpush.msra.mxu0 %v863
        %907 = vmatpush.msra.mxu0 %v862
        %908 = vmatpush.msra.mxu0 %v861
        %909 = vmatpush.msra.mxu0 %v860
        %910 = vmatpush.msra.mxu0 %v859
        %911 = vmatmul.f32.gmra.mxu0 %v893
        %v912 = vpop.f32.mrf.mxu0
        %v913 = vadd.f32 %v806, %v912
        %914 = vdwg.mxu0
        %v915 = vld [vmem:[%s12] sm:$0x1]
        %v916 = vld [vmem:[%s12 + $0x1] sm:$0x1]
        %vm917 = vcmask 1041408
        %v918 = vsel %vm917, %v913, 0.0
        %919 = vadd.xlane.f32.xlu0 %v918
        %v920 = vpop.xlane.xlu0 %919
        %v921 = vrcp.pop 128.0
        %v922 = vmul.f32 128.0, %v921
        %v923 = vsub.f32 1.0, %v922
        %v924 = vmul.f32 %v921, %v923
        %v925 = vadd.f32 %v921, %v924
        %vm926 = vweird.f32 %v921
        %v927 = vsel %vm926, %v921, %v925
        %v928 = vmul.f32 %v920, %v927
        %v929 = vsub.f32 %v913, %v928
        %v930 = vmul.f32 %v929, %v929
        %v931 = vsel %vm917, %v930, 0.0
        %932 = vadd.xlane.f32.xlu0 %v931
        %v933 = vpop.xlane.xlu0 %932
        %v934 = vmul.f32 %v933, %v927
        %v935 = vadd.f32 %v934, 1e-05
        %v936 = vrsqrt.pop %v935
        %v937 = vmul.f32 %v936, %v935
        %v938 = vmul.f32 %v937, %v936
        %v939 = vmul.f32 0.5, %v938
        %v940 = vsub.f32 1.5, %v939
        %v941 = vmul.f32 %v936, %v940
        %vm942 = vweird.f32 %v935
        %vm943 = vweird.f32 %v936
        %vm944 = vmor %vm942, %vm943
        %v945 = vsel %vm944, %v936, %v941
        %v946 = vmul.f32 %v929, %v945
        %v947 = vperm.slane %v915, 0
        %v948 = vmul.f32 %v946, %v947
        %v949 = vperm.slane %v916, 0
        %v950 = vadd.f32 %v948, %v949
        %v951 = vld [vmem:[#allocation5] sm:$0xff]
        %v952 = vld [vmem:[#allocation5 + $0x8] sm:$0xff]
        %v953 = vld [vmem:[#allocation5 + $0x10] sm:$0xff]
        %v954 = vld [vmem:[#allocation5 + $0x18] sm:$0xff]
        %v955 = vld [vmem:[#allocation5 + $0x20] sm:$0xff]
        %v956 = vld [vmem:[#allocation5 + $0x28] sm:$0xff]
        %v957 = vld [vmem:[#allocation5 + $0x30] sm:$0xff]
        %v958 = vld [vmem:[#allocation5 + $0x38] sm:$0xff]
        %v959 = vld [vmem:[#allocation5 + $0x40] sm:$0xff]
        %v960 = vld [vmem:[#allocation5 + $0x48] sm:$0xff]
        %v961 = vld [vmem:[#allocation5 + $0x50] sm:$0xff]
        %v962 = vld [vmem:[#allocation5 + $0x58] sm:$0xff]
        %v963 = vld [vmem:[#allocation5 + $0x60] sm:$0xff]
        %v964 = vld [vmem:[#allocation5 + $0x68] sm:$0xff]
        %v965 = vld [vmem:[#allocation5 + $0x70] sm:$0xff]
        %v966 = vld [vmem:[#allocation5 + $0x78] sm:$0xff]
        %967 = vmatpush.msra.mxu0 %v966
        %968 = vmatpush.msra.mxu0 %v965
        %969 = vmatpush.msra.mxu0 %v964
        %970 = vmatpush.msra.mxu0 %v963
        %971 = vmatpush.msra.mxu0 %v962
        %972 = vmatpush.msra.mxu0 %v961
        %973 = vmatpush.msra.mxu0 %v960
        %974 = vmatpush.msra.mxu0 %v959
        %975 = vmatpush.msra.mxu0 %v958
        %976 = vmatpush.msra.mxu0 %v957
        %977 = vmatpush.msra.mxu0 %v956
        %978 = vmatpush.msra.mxu0 %v955
        %979 = vmatpush.msra.mxu0 %v954
        %980 = vmatpush.msra.mxu0 %v953
        %981 = vmatpush.msra.mxu0 %v952
        %982 = vmatpush.msra.mxu0 %v951
        %983 = vmatmul.f32.gmra.mxu0 %v950
        %v984 = vpop.f32.mrf.mxu0
        %v985 = vadd.f32 0.0, %v984
        %986 = vdwg.mxu0
        %v987 = vld [vmem:[#allocation10] sm:$0xff]
        %v988 = vld [vmem:[#allocation10 + $0x8] sm:$0xff]
        %v989 = vld [vmem:[#allocation10 + $0x10] sm:$0xff]
        %v990 = vld [vmem:[#allocation10 + $0x18] sm:$0xff]
        %v991 = vld [vmem:[#allocation10 + $0x20] sm:$0xff]
        %v992 = vld [vmem:[#allocation10 + $0x28] sm:$0xff]
        %v993 = vld [vmem:[#allocation10 + $0x30] sm:$0xff]
        %v994 = vld [vmem:[#allocation10 + $0x38] sm:$0xff]
        %v995 = vld [vmem:[#allocation10 + $0x40] sm:$0xff]
        %v996 = vld [vmem:[#allocation10 + $0x48] sm:$0xff]
        %v997 = vld [vmem:[#allocation10 + $0x50] sm:$0xff]
        %v998 = vld [vmem:[#allocation10 + $0x58] sm:$0xff]
        %v999 = vld [vmem:[#allocation10 + $0x60] sm:$0xff]
        %v1000 = vld [vmem:[#allocation10 + $0x68] sm:$0xff]
        %v1001 = vld [vmem:[#allocation10 + $0x70] sm:$0xff]
        %v1002 = vld [vmem:[#allocation10 + $0x78] sm:$0xff]
        %1003 = vmatpush.msra.mxu0 %v1002
        %1004 = vmatpush.msra.mxu0 %v1001
        %1005 = vmatpush.msra.mxu0 %v1000
        %1006 = vmatpush.msra.mxu0 %v999
        %1007 = vmatpush.msra.mxu0 %v998
        %1008 = vmatpush.msra.mxu0 %v997
        %1009 = vmatpush.msra.mxu0 %v996
        %1010 = vmatpush.msra.mxu0 %v995
        %1011 = vmatpush.msra.mxu0 %v994
        %1012 = vmatpush.msra.mxu0 %v993
        %1013 = vmatpush.msra.mxu0 %v992
        %1014 = vmatpush.msra.mxu0 %v991
        %1015 = vmatpush.msra.mxu0 %v990
        %1016 = vmatpush.msra.mxu0 %v989
        %1017 = vmatpush.msra.mxu0 %v988
        %1018 = vmatpush.msra.mxu0 %v987
        %1019 = vmatmul.f32.gmra.mxu0 %v985
        %v1020 = vpop.f32.mrf.mxu0
        %v1021 = vadd.f32 0.0, %v1020
        %1022 = vdwg.mxu0
        %v1023 = vld [vmem:[#allocation13] sm:$0xff]
        %v1024 = vld [vmem:[#allocation13 + $0x8] sm:$0xff]
        %v1025 = vld [vmem:[#allocation14] sm:$0xff]
        %v1026 = vld [vmem:[#allocation14 + $0x8] sm:$0xff]
        %v1027 = vld [vmem:[%s805] sm:$0x3]
        %v1028 = vld [vmem:[%s805 + $0x2] sm:$0x3]
        %v1029 = vld [vmem:[%s805 + $0x4] sm:$0x3]
        %v1030 = vld [vmem:[%s805 + $0x6] sm:$0x3]
        %v1032 = vrot.slane %v1021, 1
        %v1033 = vperm.slane %v1021, 0
        %v1034 = vperm.slane %v1032, 0
        %v1037 = vmul.f32 %v1033, %v1023
        %v1038 = vmul.f32 %v1034, %v1024
        %vm1039 = vcmask 261120
        %v1040 = vsel %vm1039, %v1037, 0.0
        %1041 = vadd.xlane.f32.xlu0 %v1040
        %v1042 = vpop.xlane.xlu0 %1041
        %v1043 = vsel %vm1039, %v1038, 0.0
        %1044 = vadd.xlane.f32.xlu0 %v1043
        %v1045 = vpop.xlane.xlu0 %1044
        %v1046 = vmul.f32 %v1042, 0.17677669
        %v1047 = vmul.f32 %v1045, 0.17677669
        %v1048 = vmul.f32 %v1027, -1e+12
        %v1050 = vperm.slane %v1048, 0
        %v1051 = vlaneseq
        %v1052 = vshrl.u32 %v1051, 7
        %1054 = vset.pattern.permute.xlu0 %v1052
        %1055 = vperm.xlu0 %1054, %v1050
        %v1056 = vpop.permute.xlu0 %1055
        %v1057 = vperm.slane %v1048, 1
        %v1058 = vlaneseq
        %v1059 = vshrl.u32 %v1058, 7
        %1061 = vset.pattern.permute.xlu0 %v1059
        %1062 = vperm.xlu0 %1061, %v1057
        %v1063 = vpop.permute.xlu0 %1062
        %v1066 = vadd.f32 %v1046, %v1056
        %v1067 = vadd.f32 %v1047, %v1063
        %1070 = vset.pattern.permute.xlu0 0
        %1071 = vperm.xlu0 %1070, %v1066
        %v1072 = vpop.permute.xlu0 %1071
        %1073 = vset.pattern.permute.xlu0 0
        %1074 = vperm.xlu0 %1073, %v1067
        %v1075 = vpop.permute.xlu0 %1074
        %v1076 = vlaneseq
        %v1077 = vand.u32 %v1076, 127
        %v1078 = vperm.slane %v1072, %v1077
        %v1079 = vperm.slane %v1075, %v1077
        %vm1080 = vcmask 1041409
        %v1081 = vsel %vm1080, %v1079, %v1078
        %vm1083 = vcmask 58368
        %v1084 = vsel %vm1083, %v1081, -inf
        %1085 = vmax.xlane.f32.xlu0 %v1084
        %v1086 = vpop.xlane.xlu0 %1085
        %v1088 = vperm.slane %v1086, 0
        %v1089 = vperm.slane %v1086, 1
        %v1092 = vsub.f32 %v1066, %v1088
        %v1093 = vsub.f32 %v1067, %v1089
        %v1094 = vmul.f32 %v1092, 1.442695
        %v1095 = vpow.pop %v1094
        %v1096 = vmul.f32 %v1093, 1.442695
        %v1097 = vpow.pop %v1096
        %1100 = vset.pattern.permute.xlu0 0
        %1101 = vperm.xlu0 %1100, %v1095
        %v1102 = vpop.permute.xlu0 %1101
        %1103 = vset.pattern.permute.xlu0 0
        %1104 = vperm.xlu0 %1103, %v1097
        %v1105 = vpop.permute.xlu0 %1104
        %v1106 = vperm.slane %v1102, %v1077
        %v1107 = vperm.slane %v1105, %v1077
        %v1108 = vsel %vm1080, %v1107, %v1106
        %v1110 = vsel %vm1083, %v1108, 0.0
        %1111 = vadd.xlane.f32.xlu0 %v1110
        %v1112 = vpop.xlane.xlu0 %1111
        %v1114 = vperm.slane %v1112, 0
        %v1115 = vperm.slane %v1112, 1
        %v1118 = vrcp.pop %v1114
        %v1119 = vmul.f32 %v1114, %v1118
        %v1120 = vsub.f32 1.0, %v1119
        %v1121 = vmul.f32 %v1118, %v1120
        %v1122 = vadd.f32 %v1118, %v1121
        %vm1123 = vweird.f32 %v1114
        %vm1124 = vweird.f32 %v1118
        %vm1125 = vmor %vm1123, %vm1124
        %v1126 = vsel %vm1125, %v1118, %v1122
        %v1127 = vand.u32 2147483647, %v1114
        %vm1128 = vcmp.eq.f32.partialorder %v1127, 8.507059e+37
        %v1129 = vand.u32 %v1114, 2147483648
        %v1130 = vor.u32 1.1754944e-38, %v1129
        %v1131 = vsel %vm1128, %v1130, %v1126
        %v1132 = vmul.f32 %v1095, %v1131
        %v1133 = vrcp.pop %v1115
        %v1134 = vmul.f32 %v1115, %v1133
        %v1135 = vsub.f32 1.0, %v1134
        %v1136 = vmul.f32 %v1133, %v1135
        %v1137 = vadd.f32 %v1133, %v1136
        %vm1138 = vweird.f32 %v1115
        %vm1139 = vweird.f32 %v1133
        %vm1140 = vmor %vm1138, %vm1139
        %v1141 = vsel %vm1140, %v1133, %v1137
        %v1142 = vand.u32 2147483647, %v1115
        %vm1143 = vcmp.eq.f32.partialorder %v1142, 8.507059e+37
        %v1144 = vand.u32 %v1115, 2147483648
        %v1145 = vor.u32 1.1754944e-38, %v1144
        %v1146 = vsel %vm1143, %v1145, %v1141
        %v1147 = vmul.f32 %v1097, %v1146
        %1149 = vset.pattern.permute.xlu0 0
        %1150 = vperm.xlu0 %1149, %v1132
        %v1151 = vpop.permute.xlu0 %1150
        %1154 = vset.pattern.permute.xlu0 0
        %1155 = vperm.xlu0 %1154, %v1147
        %v1156 = vpop.permute.xlu0 %1155
        %v1158 = vmul.f32 %v1151, %v1025
        %v1159 = vmul.f32 %v1156, %v1026
        %v1160 = vsel %vm1039, %v1158, 0.0
        %v1161 = vrot.slane %v1160, 4
        %v1162 = vadd.f32 %v1160, %v1161
        %v1163 = vrot.slane %v1162, 2
        %v1164 = vadd.f32 %v1162, %v1163
        %v1165 = vrot.slane %v1164, 1
        %v1166 = vadd.f32 %v1164, %v1165
        %v1167 = vsel %vm1039, %v1159, 0.0
        %v1168 = vrot.slane %v1167, 4
        %v1169 = vadd.f32 %v1167, %v1168
        %v1170 = vrot.slane %v1169, 2
        %v1171 = vadd.f32 %v1169, %v1170
        %v1172 = vrot.slane %v1171, 1
        %v1173 = vadd.f32 %v1171, %v1172
        %v1174 = vld [vmem:[#allocation11] sm:$0xff]
        %v1175 = vld [vmem:[#allocation11 + $0x8] sm:$0xff]
        %v1176 = vld [vmem:[#allocation11 + $0x10] sm:$0xff]
        %v1177 = vld [vmem:[#allocation11 + $0x18] sm:$0xff]
        %1180 = vrot.lane.b32.xlu0 %v1037, 96
        %v1181 = vpop.permute.xlu0 %1180
        %1182 = vrot.lane.b32.xlu0 %v1038, 96
        %v1183 = vpop.permute.xlu0 %1182
        %v1186 = vsel %vm1039, %v1181, 0.0
        %1187 = vadd.xlane.f32.xlu0 %v1186
        %v1188 = vpop.xlane.xlu0 %1187
        %v1189 = vsel %vm1039, %v1183, 0.0
        %1190 = vadd.xlane.f32.xlu0 %v1189
        %v1191 = vpop.xlane.xlu0 %1190
        %v1192 = vmul.f32 %v1188, 0.17677669
        %v1193 = vmul.f32 %v1191, 0.17677669
        %v1194 = vmul.f32 %v1028, -1e+12
        %v1196 = vperm.slane %v1194, 0
        %v1197 = vlaneseq
        %v1198 = vshrl.u32 %v1197, 7
        %1200 = vset.pattern.permute.xlu0 %v1198
        %1201 = vperm.xlu0 %1200, %v1196
        %v1202 = vpop.permute.xlu0 %1201
        %v1203 = vperm.slane %v1194, 1
        %v1204 = vlaneseq
        %v1205 = vshrl.u32 %v1204, 7
        %1207 = vset.pattern.permute.xlu0 %v1205
        %1208 = vperm.xlu0 %1207, %v1203
        %v1209 = vpop.permute.xlu0 %1208
        %v1212 = vadd.f32 %v1192, %v1202
        %v1213 = vadd.f32 %v1193, %v1209
        %1216 = vset.pattern.permute.xlu0 0
        %1217 = vperm.xlu0 %1216, %v1212
        %v1218 = vpop.permute.xlu0 %1217
        %1219 = vset.pattern.permute.xlu0 0
        %1220 = vperm.xlu0 %1219, %v1213
        %v1221 = vpop.permute.xlu0 %1220
        %v1222 = vperm.slane %v1218, %v1077
        %v1223 = vperm.slane %v1221, %v1077
        %v1224 = vsel %vm1080, %v1223, %v1222
        %v1226 = vsel %vm1083, %v1224, -inf
        %1227 = vmax.xlane.f32.xlu0 %v1226
        %v1228 = vpop.xlane.xlu0 %1227
        %v1230 = vperm.slane %v1228, 0
        %v1231 = vperm.slane %v1228, 1
        %v1234 = vsub.f32 %v1212, %v1230
        %v1235 = vsub.f32 %v1213, %v1231
        %v1236 = vmul.f32 %v1234, 1.442695
        %v1237 = vpow.pop %v1236
        %v1238 = vmul.f32 %v1235, 1.442695
        %v1239 = vpow.pop %v1238
        %1242 = vset.pattern.permute.xlu0 0
        %1243 = vperm.xlu0 %1242, %v1237
        %v1244 = vpop.permute.xlu0 %1243
        %1245 = vset.pattern.permute.xlu0 0
        %1246 = vperm.xlu0 %1245, %v1239
        %v1247 = vpop.permute.xlu0 %1246
        %v1248 = vperm.slane %v1244, %v1077
        %v1249 = vperm.slane %v1247, %v1077
        %v1250 = vsel %vm1080, %v1249, %v1248
        %v1252 = vsel %vm1083, %v1250, 0.0
        %1253 = vadd.xlane.f32.xlu0 %v1252
        %v1254 = vpop.xlane.xlu0 %1253
        %v1256 = vperm.slane %v1254, 0
        %v1257 = vperm.slane %v1254, 1
        %v1260 = vrcp.pop %v1256
        %v1261 = vmul.f32 %v1256, %v1260
        %v1262 = vsub.f32 1.0, %v1261
        %v1263 = vmul.f32 %v1260, %v1262
        %v1264 = vadd.f32 %v1260, %v1263
        %vm1265 = vweird.f32 %v1256
        %vm1266 = vweird.f32 %v1260
        %vm1267 = vmor %vm1265, %vm1266
        %v1268 = vsel %vm1267, %v1260, %v1264
        %v1269 = vand.u32 2147483647, %v1256
        %vm1270 = vcmp.eq.f32.partialorder %v1269, 8.507059e+37
        %v1271 = vand.u32 %v1256, 2147483648
        %v1272 = vor.u32 1.1754944e-38, %v1271
        %v1273 = vsel %vm1270, %v1272, %v1268
        %v1274 = vmul.f32 %v1237, %v1273
        %v1275 = vrcp.pop %v1257
        %v1276 = vmul.f32 %v1257, %v1275
        %v1277 = vsub.f32 1.0, %v1276
        %v1278 = vmul.f32 %v1275, %v1277
        %v1279 = vadd.f32 %v1275, %v1278
        %vm1280 = vweird.f32 %v1257
        %vm1281 = vweird.f32 %v1275
        %vm1282 = vmor %vm1280, %vm1281
        %v1283 = vsel %vm1282, %v1275, %v1279
        %v1284 = vand.u32 2147483647, %v1257
        %vm1285 = vcmp.eq.f32.partialorder %v1284, 8.507059e+37
        %v1286 = vand.u32 %v1257, 2147483648
        %v1287 = vor.u32 1.1754944e-38, %v1286
        %v1288 = vsel %vm1285, %v1287, %v1283
        %v1289 = vmul.f32 %v1239, %v1288
        %1291 = vset.pattern.permute.xlu0 0
        %1292 = vperm.xlu0 %1291, %v1274
        %v1293 = vpop.permute.xlu0 %1292
        %1296 = vset.pattern.permute.xlu0 0
        %1297 = vperm.xlu0 %1296, %v1289
        %v1298 = vpop.permute.xlu0 %1297
        %v1300 = vmul.f32 %v1293, %v1025
        %v1301 = vmul.f32 %v1298, %v1026
        %vm1302 = vcmask 523520
        %v1303 = vsel %vm1302, %v1300, 0.0
        %v1304 = vrot.slane %v1303, 4
        %v1305 = vadd.f32 %v1303, %v1304
        %v1306 = vrot.slane %v1305, 2
        %v1307 = vadd.f32 %v1305, %v1306
        %v1308 = vrot.slane %v1307, 1
        %v1309 = vadd.f32 %v1307, %v1308
        %v1310 = vsel %vm1302, %v1301, 0.0
        %v1311 = vrot.slane %v1310, 4
        %v1312 = vadd.f32 %v1310, %v1311
        %v1313 = vrot.slane %v1312, 2
        %v1314 = vadd.f32 %v1312, %v1313
        %v1315 = vrot.slane %v1314, 1
        %v1316 = vadd.f32 %v1314, %v1315
        %v1317 = vld [vmem:[#allocation11 + $0x20] sm:$0xff]
        %v1318 = vld [vmem:[#allocation11 + $0x28] sm:$0xff]
        %v1319 = vld [vmem:[#allocation11 + $0x30] sm:$0xff]
        %v1320 = vld [vmem:[#allocation11 + $0x38] sm:$0xff]
        %v1323 = vsel %vm1080, %v1316, %v1309
        %1324 = vrot.lane.b32.xlu0 %v1323, 96
        %v1325 = vpop.permute.xlu0 %1324
        %v1326 = vsel %vm1039, %v1325, 0
        %1328 = vmatpush.msra.mxu0 0.0
        %1329 = vmatpush.msra.mxu0 0.0
        %1330 = vmatpush.msra.mxu0 0.0
        %1331 = vmatpush.msra.mxu0 0.0
        %1332 = vmatpush.msra.mxu0 0.0
        %1333 = vmatpush.msra.mxu0 0.0
        %1334 = vmatpush.msra.mxu0 0.0
        %1335 = vmatpush.msra.mxu0 0.0
        %1336 = vmatpush.msra.mxu0 0.0
        %1337 = vmatpush.msra.mxu0 0.0
        %1338 = vmatpush.msra.mxu0 0.0
        %1339 = vmatpush.msra.mxu0 0.0
        %1340 = vmatpush.msra.mxu0 %v1320
        %1341 = vmatpush.msra.mxu0 %v1319
        %1342 = vmatpush.msra.mxu0 %v1318
        %1343 = vmatpush.msra.mxu0 %v1317
        %1344 = vmatmul.f32.gmra.mxu0 %v1326
        %v1345 = vpop.f32.mrf.mxu0
        %v1346 = vadd.f32 0.0, %v1345
        %1347 = vdwg.mxu0
        %v1350 = vsel %vm1080, %v1173, %v1166
        %v1351 = vsel %vm1039, %v1350, 0
        %1353 = vmatpush.msra.mxu0 0.0
        %1354 = vmatpush.msra.mxu0 0.0
        %1355 = vmatpush.msra.mxu0 0.0
        %1356 = vmatpush.msra.mxu0 0.0
        %1357 = vmatpush.msra.mxu0 0.0
        %1358 = vmatpush.msra.mxu0 0.0
        %1359 = vmatpush.msra.mxu0 0.0
        %1360 = vmatpush.msra.mxu0 0.0
        %1361 = vmatpush.msra.mxu0 0.0
        %1362 = vmatpush.msra.mxu0 0.0
        %1363 = vmatpush.msra.mxu0 0.0
        %1364 = vmatpush.msra.mxu0 0.0
        %1365 = vmatpush.msra.mxu0 %v1177
        %1366 = vmatpush.msra.mxu0 %v1176
        %1367 = vmatpush.msra.mxu0 %v1175
        %1368 = vmatpush.msra.mxu0 %v1174
        %1369 = vmatmul.f32.gmra.mxu0 %v1351
        %v1370 = vpop.f32.mrf.mxu0
        %v1371 = vadd.f32 %v1346, %v1370
        %1372 = vdwg.mxu0
        %1373 = vrot.lane.b32.xlu0 %v1037, 64
        %v1374 = vpop.permute.xlu0 %1373
        %1375 = vrot.lane.b32.xlu0 %v1038, 64
        %v1376 = vpop.permute.xlu0 %1375
        %v1379 = vsel %vm1039, %v1374, 0.0
        %1380 = vadd.xlane.f32.xlu0 %v1379
        %v1381 = vpop.xlane.xlu0 %1380
        %v1382 = vsel %vm1039, %v1376, 0.0
        %1383 = vadd.xlane.f32.xlu0 %v1382
        %v1384 = vpop.xlane.xlu0 %1383
        %v1385 = vmul.f32 %v1381, 0.17677669
        %v1386 = vmul.f32 %v1384, 0.17677669
        %v1387 = vmul.f32 %v1029, -1e+12
        %v1389 = vperm.slane %v1387, 0
        %v1390 = vlaneseq
        %v1391 = vshrl.u32 %v1390, 7
        %1393 = vset.pattern.permute.xlu0 %v1391
        %1394 = vperm.xlu0 %1393, %v1389
        %v1395 = vpop.permute.xlu0 %1394
        %v1396 = vperm.slane %v1387, 1
        %v1397 = vlaneseq
        %v1398 = vshrl.u32 %v1397, 7
        %1400 = vset.pattern.permute.xlu0 %v1398
        %1401 = vperm.xlu0 %1400, %v1396
        %v1402 = vpop.permute.xlu0 %1401
        %v1405 = vadd.f32 %v1385, %v1395
        %v1406 = vadd.f32 %v1386, %v1402
        %1409 = vset.pattern.permute.xlu0 0
        %1410 = vperm.xlu0 %1409, %v1405
        %v1411 = vpop.permute.xlu0 %1410
        %1412 = vset.pattern.permute.xlu0 0
        %1413 = vperm.xlu0 %1412, %v1406
        %v1414 = vpop.permute.xlu0 %1413
        %v1415 = vperm.slane %v1411, %v1077
        %v1416 = vperm.slane %v1414, %v1077
        %v1417 = vsel %vm1080, %v1416, %v1415
        %v1419 = vsel %vm1083, %v1417, -inf
        %1420 = vmax.xlane.f32.xlu0 %v1419
        %v1421 = vpop.xlane.xlu0 %1420
        %v1423 = vperm.slane %v1421, 0
        %v1424 = vperm.slane %v1421, 1
        %v1427 = vsub.f32 %v1405, %v1423
        %v1428 = vsub.f32 %v1406, %v1424
        %v1429 = vmul.f32 %v1427, 1.442695
        %v1430 = vpow.pop %v1429
        %v1431 = vmul.f32 %v1428, 1.442695
        %v1432 = vpow.pop %v1431
        %1435 = vset.pattern.permute.xlu0 0
        %1436 = vperm.xlu0 %1435, %v1430
        %v1437 = vpop.permute.xlu0 %1436
        %1438 = vset.pattern.permute.xlu0 0
        %1439 = vperm.xlu0 %1438, %v1432
        %v1440 = vpop.permute.xlu0 %1439
        %v1441 = vperm.slane %v1437, %v1077
        %v1442 = vperm.slane %v1440, %v1077
        %v1443 = vsel %vm1080, %v1442, %v1441
        %v1445 = vsel %vm1083, %v1443, 0.0
        %1446 = vadd.xlane.f32.xlu0 %v1445
        %v1447 = vpop.xlane.xlu0 %1446
        %v1449 = vperm.slane %v1447, 0
        %v1450 = vperm.slane %v1447, 1
        %v1453 = vrcp.pop %v1449
        %v1454 = vmul.f32 %v1449, %v1453
        %v1455 = vsub.f32 1.0, %v1454
        %v1456 = vmul.f32 %v1453, %v1455
        %v1457 = vadd.f32 %v1453, %v1456
        %vm1458 = vweird.f32 %v1449
        %vm1459 = vweird.f32 %v1453
        %vm1460 = vmor %vm1458, %vm1459
        %v1461 = vsel %vm1460, %v1453, %v1457
        %v1462 = vand.u32 2147483647, %v1449
        %vm1463 = vcmp.eq.f32.partialorder %v1462, 8.507059e+37
        %v1464 = vand.u32 %v1449, 2147483648
        %v1465 = vor.u32 1.1754944e-38, %v1464
        %v1466 = vsel %vm1463, %v1465, %v1461
        %v1467 = vmul.f32 %v1430, %v1466
        %v1468 = vrcp.pop %v1450
        %v1469 = vmul.f32 %v1450, %v1468
        %v1470 = vsub.f32 1.0, %v1469
        %v1471 = vmul.f32 %v1468, %v1470
        %v1472 = vadd.f32 %v1468, %v1471
        %vm1473 = vweird.f32 %v1450
        %vm1474 = vweird.f32 %v1468
        %vm1475 = vmor %vm1473, %vm1474
        %v1476 = vsel %vm1475, %v1468, %v1472
        %v1477 = vand.u32 2147483647, %v1450
        %vm1478 = vcmp.eq.f32.partialorder %v1477, 8.507059e+37
        %v1479 = vand.u32 %v1450, 2147483648
        %v1480 = vor.u32 1.1754944e-38, %v1479
        %v1481 = vsel %vm1478, %v1480, %v1476
        %v1482 = vmul.f32 %v1432, %v1481
        %1484 = vset.pattern.permute.xlu0 0
        %1485 = vperm.xlu0 %1484, %v1467
        %v1486 = vpop.permute.xlu0 %1485
        %1489 = vset.pattern.permute.xlu0 0
        %1490 = vperm.xlu0 %1489, %v1482
        %v1491 = vpop.permute.xlu0 %1490
        %v1493 = vmul.f32 %v1486, %v1025
        %v1494 = vmul.f32 %v1491, %v1026
        %vm1495 = vcmask 785920
        %v1496 = vsel %vm1495, %v1493, 0.0
        %v1497 = vrot.slane %v1496, 4
        %v1498 = vadd.f32 %v1496, %v1497
        %v1499 = vrot.slane %v1498, 2
        %v1500 = vadd.f32 %v1498, %v1499
        %v1501 = vrot.slane %v1500, 1
        %v1502 = vadd.f32 %v1500, %v1501
        %v1503 = vsel %vm1495, %v1494, 0.0
        %v1504 = vrot.slane %v1503, 4
        %v1505 = vadd.f32 %v1503, %v1504
        %v1506 = vrot.slane %v1505, 2
        %v1507 = vadd.f32 %v1505, %v1506
        %v1508 = vrot.slane %v1507, 1
        %v1509 = vadd.f32 %v1507, %v1508
        %v1510 = vld [vmem:[#allocation11 + $0x40] sm:$0xff]
        %v1511 = vld [vmem:[#allocation11 + $0x48] sm:$0xff]
        %v1512 = vld [vmem:[#allocation11 + $0x50] sm:$0xff]
        %v1513 = vld [vmem:[#allocation11 + $0x58] sm:$0xff]
        %v1516 = vsel %vm1080, %v1509, %v1502
        %1517 = vrot.lane.b32.xlu0 %v1516, 64
        %v1518 = vpop.permute.xlu0 %1517
        %v1519 = vsel %vm1039, %v1518, 0
        %1521 = vmatpush.msra.mxu0 0.0
        %1522 = vmatpush.msra.mxu0 0.0
        %1523 = vmatpush.msra.mxu0 0.0
        %1524 = vmatpush.msra.mxu0 0.0
        %1525 = vmatpush.msra.mxu0 0.0
        %1526 = vmatpush.msra.mxu0 0.0
        %1527 = vmatpush.msra.mxu0 0.0
        %1528 = vmatpush.msra.mxu0 0.0
        %1529 = vmatpush.msra.mxu0 0.0
        %1530 = vmatpush.msra.mxu0 0.0
        %1531 = vmatpush.msra.mxu0 0.0
        %1532 = vmatpush.msra.mxu0 0.0
        %1533 = vmatpush.msra.mxu0 %v1513
        %1534 = vmatpush.msra.mxu0 %v1512
        %1535 = vmatpush.msra.mxu0 %v1511
        %1536 = vmatpush.msra.mxu0 %v1510
        %1537 = vmatmul.f32.gmra.mxu0 %v1519
        %v1538 = vpop.f32.mrf.mxu0
        %v1539 = vadd.f32 0.0, %v1538
        %1540 = vdwg.mxu0
        %v1541 = vadd.f32 %v1371, %v1539
        %1542 = vrot.lane.b32.xlu0 %v1037, 32
        %v1543 = vpop.permute.xlu0 %1542
        %1544 = vrot.lane.b32.xlu0 %v1038, 32
        %v1545 = vpop.permute.xlu0 %1544
        %v1548 = vsel %vm1039, %v1543, 0.0
        %1549 = vadd.xlane.f32.xlu0 %v1548
        %v1550 = vpop.xlane.xlu0 %1549
        %v1551 = vsel %vm1039, %v1545, 0.0
        %1552 = vadd.xlane.f32.xlu0 %v1551
        %v1553 = vpop.xlane.xlu0 %1552
        %v1554 = vmul.f32 %v1550, 0.17677669
        %v1555 = vmul.f32 %v1553, 0.17677669
        %v1556 = vmul.f32 %v1030, -1e+12
        %v1558 = vperm.slane %v1556, 0
        %v1559 = vlaneseq
        %v1560 = vshrl.u32 %v1559, 7
        %1562 = vset.pattern.permute.xlu0 %v1560
        %1563 = vperm.xlu0 %1562, %v1558
        %v1564 = vpop.permute.xlu0 %1563
        %v1565 = vperm.slane %v1556, 1
        %v1566 = vlaneseq
        %v1567 = vshrl.u32 %v1566, 7
        %1569 = vset.pattern.permute.xlu0 %v1567
        %1570 = vperm.xlu0 %1569, %v1565
        %v1571 = vpop.permute.xlu0 %1570
        %v1574 = vadd.f32 %v1554, %v1564
        %v1575 = vadd.f32 %v1555, %v1571
        %1578 = vset.pattern.permute.xlu0 0
        %1579 = vperm.xlu0 %1578, %v1574
        %v1580 = vpop.permute.xlu0 %1579
        %1581 = vset.pattern.permute.xlu0 0
        %1582 = vperm.xlu0 %1581, %v1575
        %v1583 = vpop.permute.xlu0 %1582
        %v1584 = vperm.slane %v1580, %v1077
        %v1585 = vperm.slane %v1583, %v1077
        %v1586 = vsel %vm1080, %v1585, %v1584
        %v1588 = vsel %vm1083, %v1586, -inf
        %1589 = vmax.xlane.f32.xlu0 %v1588
        %v1590 = vpop.xlane.xlu0 %1589
        %v1592 = vperm.slane %v1590, 0
        %v1593 = vperm.slane %v1590, 1
        %v1596 = vsub.f32 %v1574, %v1592
        %v1597 = vsub.f32 %v1575, %v1593
        %v1598 = vmul.f32 %v1596, 1.442695
        %v1599 = vpow.pop %v1598
        %v1600 = vmul.f32 %v1597, 1.442695
        %v1601 = vpow.pop %v1600
        %1604 = vset.pattern.permute.xlu0 0
        %1605 = vperm.xlu0 %1604, %v1599
        %v1606 = vpop.permute.xlu0 %1605
        %1607 = vset.pattern.permute.xlu0 0
        %1608 = vperm.xlu0 %1607, %v1601
        %v1609 = vpop.permute.xlu0 %1608
        %v1610 = vperm.slane %v1606, %v1077
        %v1611 = vperm.slane %v1609, %v1077
        %v1612 = vsel %vm1080, %v1611, %v1610
        %v1614 = vsel %vm1083, %v1612, 0.0
        %1615 = vadd.xlane.f32.xlu0 %v1614
        %v1616 = vpop.xlane.xlu0 %1615
        %v1618 = vperm.slane %v1616, 0
        %v1619 = vperm.slane %v1616, 1
        %v1622 = vrcp.pop %v1618
        %v1623 = vmul.f32 %v1618, %v1622
        %v1624 = vsub.f32 1.0, %v1623
        %v1625 = vmul.f32 %v1622, %v1624
        %v1626 = vadd.f32 %v1622, %v1625
        %vm1627 = vweird.f32 %v1618
        %vm1628 = vweird.f32 %v1622
        %vm1629 = vmor %vm1627, %vm1628
        %v1630 = vsel %vm1629, %v1622, %v1626
        %v1631 = vand.u32 2147483647, %v1618
        %vm1632 = vcmp.eq.f32.partialorder %v1631, 8.507059e+37
        %v1633 = vand.u32 %v1618, 2147483648
        %v1634 = vor.u32 1.1754944e-38, %v1633
        %v1635 = vsel %vm1632, %v1634, %v1630
        %v1636 = vmul.f32 %v1599, %v1635
        %v1637 = vrcp.pop %v1619
        %v1638 = vmul.f32 %v1619, %v1637
        %v1639 = vsub.f32 1.0, %v1638
        %v1640 = vmul.f32 %v1637, %v1639
        %v1641 = vadd.f32 %v1637, %v1640
        %vm1642 = vweird.f32 %v1619
        %vm1643 = vweird.f32 %v1637
        %vm1644 = vmor %vm1642, %vm1643
        %v1645 = vsel %vm1644, %v1637, %v1641
        %v1646 = vand.u32 2147483647, %v1619
        %vm1647 = vcmp.eq.f32.partialorder %v1646, 8.507059e+37
        %v1648 = vand.u32 %v1619, 2147483648
        %v1649 = vor.u32 1.1754944e-38, %v1648
        %v1650 = vsel %vm1647, %v1649, %v1645
        %v1651 = vmul.f32 %v1601, %v1650
        %1653 = vset.pattern.permute.xlu0 0
        %1654 = vperm.xlu0 %1653, %v1636
        %v1655 = vpop.permute.xlu0 %1654
        %1658 = vset.pattern.permute.xlu0 0
        %1659 = vperm.xlu0 %1658, %v1651
        %v1660 = vpop.permute.xlu0 %1659
        %v1662 = vmul.f32 %v1655, %v1025
        %v1663 = vmul.f32 %v1660, %v1026
        %vm1664 = vcmask 1048320
        %v1665 = vsel %vm1664, %v1662, 0.0
        %v1666 = vrot.slane %v1665, 4
        %v1667 = vadd.f32 %v1665, %v1666
        %v1668 = vrot.slane %v1667, 2
        %v1669 = vadd.f32 %v1667, %v1668
        %v1670 = vrot.slane %v1669, 1
        %v1671 = vadd.f32 %v1669, %v1670
        %v1672 = vsel %vm1664, %v1663, 0.0
        %v1673 = vrot.slane %v1672, 4
        %v1674 = vadd.f32 %v1672, %v1673
        %v1675 = vrot.slane %v1674, 2
        %v1676 = vadd.f32 %v1674, %v1675
        %v1677 = vrot.slane %v1676, 1
        %v1678 = vadd.f32 %v1676, %v1677
        %v1679 = vld [vmem:[#allocation11 + $0x60] sm:$0xff]
        %v1680 = vld [vmem:[#allocation11 + $0x68] sm:$0xff]
        %v1681 = vld [vmem:[#allocation11 + $0x70] sm:$0xff]
        %v1682 = vld [vmem:[#allocation11 + $0x78] sm:$0xff]
        %v1685 = vsel %vm1080, %v1678, %v1671
        %1686 = vrot.lane.b32.xlu0 %v1685, 32
        %v1687 = vpop.permute.xlu0 %1686
        %v1688 = vsel %vm1039, %v1687, 0
        %1690 = vmatpush.msra.mxu0 0.0
        %1691 = vmatpush.msra.mxu0 0.0
        %1692 = vmatpush.msra.mxu0 0.0
        %1693 = vmatpush.msra.mxu0 0.0
        %1694 = vmatpush.msra.mxu0 0.0
        %1695 = vmatpush.msra.mxu0 0.0
        %1696 = vmatpush.msra.mxu0 0.0
        %1697 = vmatpush.msra.mxu0 0.0
        %1698 = vmatpush.msra.mxu0 0.0
        %1699 = vmatpush.msra.mxu0 0.0
        %1700 = vmatpush.msra.mxu0 0.0
        %1701 = vmatpush.msra.mxu0 0.0
        %1702 = vmatpush.msra.mxu0 %v1682
        %1703 = vmatpush.msra.mxu0 %v1681
        %1704 = vmatpush.msra.mxu0 %v1680
        %1705 = vmatpush.msra.mxu0 %v1679
        %1706 = vmatmul.f32.gmra.mxu0 %v1688
        %v1707 = vpop.f32.mrf.mxu0
        %v1708 = vadd.f32 0.0, %v1707
        %1709 = vdwg.mxu0
        %v1710 = vadd.f32 %v1541, %v1708
        %v1711 = vadd.f32 %v1710, %v950
        %v1712 = vld [vmem:[%s12 + $0x2] sm:$0x1]
        %v1713 = vld [vmem:[%s12 + $0x3] sm:$0x1]
        %v1714 = vsel %vm917, %v1711, 0.0
        %1715 = vadd.xlane.f32.xlu0 %v1714
        %v1716 = vpop.xlane.xlu0 %1715
        %v1717 = vmul.f32 %v1716, %v927
        %v1718 = vsub.f32 %v1711, %v1717
        %v1719 = vmul.f32 %v1718, %v1718
        %v1720 = vsel %vm917, %v1719, 0.0
        %1721 = vadd.xlane.f32.xlu0 %v1720
        %v1722 = vpop.xlane.xlu0 %1721
        %v1723 = vmul.f32 %v1722, %v927
        %v1724 = vadd.f32 %v1723, 1e-05
        %v1725 = vrsqrt.pop %v1724
        %v1726 = vmul.f32 %v1725, %v1724
        %v1727 = vmul.f32 %v1726, %v1725
        %v1728 = vmul.f32 0.5, %v1727
        %v1729 = vsub.f32 1.5, %v1728
        %v1730 = vmul.f32 %v1725, %v1729
        %vm1731 = vweird.f32 %v1724
        %vm1732 = vweird.f32 %v1725
        %vm1733 = vmor %vm1731, %vm1732
        %v1734 = vsel %vm1733, %v1725, %v1730
        %v1735 = vmul.f32 %v1718, %v1734
        %v1736 = vperm.slane %v1712, 0
        %v1737 = vmul.f32 %v1735, %v1736
        %v1738 = vperm.slane %v1713, 0
        %v1739 = vadd.f32 %v1737, %v1738
        %v1740 = vld [vmem:[#allocation16] sm:$0xff]
        %v1741 = vld [vmem:[#allocation16 + $0x8] sm:$0xff]
        %v1742 = vld [vmem:[#allocation16 + $0x10] sm:$0xff]
        %v1743 = vld [vmem:[#allocation16 + $0x18] sm:$0xff]
        %v1744 = vld [vmem:[#allocation16 + $0x20] sm:$0xff]
        %v1745 = vld [vmem:[#allocation16 + $0x28] sm:$0xff]
        %v1746 = vld [vmem:[#allocation16 + $0x30] sm:$0xff]
        %v1747 = vld [vmem:[#allocation16 + $0x38] sm:$0xff]
        %v1748 = vld [vmem:[#allocation16 + $0x40] sm:$0xff]
        %v1749 = vld [vmem:[#allocation16 + $0x48] sm:$0xff]
        %v1750 = vld [vmem:[#allocation16 + $0x50] sm:$0xff]
        %v1751 = vld [vmem:[#allocation16 + $0x58] sm:$0xff]
        %v1752 = vld [vmem:[#allocation16 + $0x60] sm:$0xff]
        %v1753 = vld [vmem:[#allocation16 + $0x68] sm:$0xff]
        %v1754 = vld [vmem:[#allocation16 + $0x70] sm:$0xff]
        %v1755 = vld [vmem:[#allocation16 + $0x78] sm:$0xff]
        %v1756 = vld [vmem:[#allocation17] sm:$0xff]
        %v1757 = vld [vmem:[#allocation17 + $0x8] sm:$0xff]
        %v1758 = vld [vmem:[#allocation17 + $0x10] sm:$0xff]
        %v1759 = vld [vmem:[#allocation17 + $0x18] sm:$0xff]
        %v1760 = vld [vmem:[#allocation17 + $0x20] sm:$0xff]
        %v1761 = vld [vmem:[#allocation17 + $0x28] sm:$0xff]
        %v1762 = vld [vmem:[#allocation17 + $0x30] sm:$0xff]
        %v1763 = vld [vmem:[#allocation17 + $0x38] sm:$0xff]
        %v1764 = vld [vmem:[#allocation17 + $0x40] sm:$0xff]
        %v1765 = vld [vmem:[#allocation17 + $0x48] sm:$0xff]
        %v1766 = vld [vmem:[#allocation17 + $0x50] sm:$0xff]
        %v1767 = vld [vmem:[#allocation17 + $0x58] sm:$0xff]
        %v1768 = vld [vmem:[#allocation17 + $0x60] sm:$0xff]
        %v1769 = vld [vmem:[#allocation17 + $0x68] sm:$0xff]
        %v1770 = vld [vmem:[#allocation17 + $0x70] sm:$0xff]
        %v1771 = vld [vmem:[#allocation17 + $0x78] sm:$0xff]
        %1772 = vmatpush.msra.mxu0 %v1755
        %1773 = vmatpush.msra.mxu0 %v1754
        %1774 = vmatpush.msra.mxu0 %v1753
        %1775 = vmatpush.msra.mxu0 %v1752
        %1776 = vmatpush.msra.mxu0 %v1751
        %1777 = vmatpush.msra.mxu0 %v1750
        %1778 = vmatpush.msra.mxu0 %v1749
        %1779 = vmatpush.msra.mxu0 %v1748
        %1780 = vmatpush.msra.mxu0 %v1747
        %1781 = vmatpush.msra.mxu0 %v1746
        %1782 = vmatpush.msra.mxu0 %v1745
        %1783 = vmatpush.msra.mxu0 %v1744
        %1784 = vmatpush.msra.mxu0 %v1743
        %1785 = vmatpush.msra.mxu0 %v1742
        %1786 = vmatpush.msra.mxu0 %v1741
        %1787 = vmatpush.msra.mxu0 %v1740
        %1788 = vmatmul.f32.gmra.mxu0 %v1739
        %v1789 = vpop.f32.mrf.mxu0
        %v1790 = vadd.f32 0.0, %v1789
        %1791 = vdwg.mxu0
        %1792 = vmatpush.msra.mxu0 %v1771
        %1793 = vmatpush.msra.mxu0 %v1770
        %1794 = vmatpush.msra.mxu0 %v1769
        %1795 = vmatpush.msra.mxu0 %v1768
        %1796 = vmatpush.msra.mxu0 %v1767
        %1797 = vmatpush.msra.mxu0 %v1766
        %1798 = vmatpush.msra.mxu0 %v1765
        %1799 = vmatpush.msra.mxu0 %v1764
        %1800 = vmatpush.msra.mxu0 %v1763
        %1801 = vmatpush.msra.mxu0 %v1762
        %1802 = vmatpush.msra.mxu0 %v1761
        %1803 = vmatpush.msra.mxu0 %v1760
        %1804 = vmatpush.msra.mxu0 %v1759
        %1805 = vmatpush.msra.mxu0 %v1758
        %1806 = vmatpush.msra.mxu0 %v1757
        %1807 = vmatpush.msra.mxu0 %v1756
        %1808 = vmatmul.f32.gmra.mxu0 %v1790
        %v1809 = vpop.f32.mrf.mxu0
        %v1810 = vadd.f32 0.0, %v1809
        %1811 = vdwg.mxu0
        %v1812 = vadd.f32 %v1810, %v1739
        %v1813 = vld [vmem:[%s12 + $0x4] sm:$0x1]
        %v1814 = vld [vmem:[%s12 + $0x5] sm:$0x1]
        %v1815 = vsel %vm917, %v1812, 0.0
        %1816 = vadd.xlane.f32.xlu0 %v1815
        %v1817 = vpop.xlane.xlu0 %1816
        %v1818 = vmul.f32 %v1817, %v927
        %v1819 = vsub.f32 %v1812, %v1818
        %v1820 = vmul.f32 %v1819, %v1819
        %v1821 = vsel %vm917, %v1820, 0.0
        %1822 = vadd.xlane.f32.xlu0 %v1821
        %v1823 = vpop.xlane.xlu0 %1822
        %v1824 = vmul.f32 %v1823, %v927
        %v1825 = vadd.f32 %v1824, 1e-05
        %v1826 = vrsqrt.pop %v1825
        %v1827 = vmul.f32 %v1826, %v1825
        %v1828 = vmul.f32 %v1827, %v1826
        %v1829 = vmul.f32 0.5, %v1828
        %v1830 = vsub.f32 1.5, %v1829
        %v1831 = vmul.f32 %v1826, %v1830
        %vm1832 = vweird.f32 %v1825
        %vm1833 = vweird.f32 %v1826
        %vm1834 = vmor %vm1832, %vm1833
        %v1835 = vsel %vm1834, %v1826, %v1831
        %v1836 = vmul.f32 %v1819, %v1835
        %v1837 = vperm.slane %v1813, 0
        %v1838 = vmul.f32 %v1836, %v1837
        %v1839 = vperm.slane %v1814, 0
        %v1840 = vadd.f32 %v1838, %v1839
        %v1841 = vld [vmem:[#allocation19] sm:$0xff]
        %v1842 = vld [vmem:[#allocation19 + $0x8] sm:$0xff]
        %v1843 = vld [vmem:[#allocation19 + $0x10] sm:$0xff]
        %v1844 = vld [vmem:[#allocation19 + $0x18] sm:$0xff]
        %v1845 = vld [vmem:[#allocation19 + $0x20] sm:$0xff]
        %v1846 = vld [vmem:[#allocation19 + $0x28] sm:$0xff]
        %v1847 = vld [vmem:[#allocation19 + $0x30] sm:$0xff]
        %v1848 = vld [vmem:[#allocation19 + $0x38] sm:$0xff]
        %v1849 = vld [vmem:[#allocation19 + $0x40] sm:$0xff]
        %v1850 = vld [vmem:[#allocation19 + $0x48] sm:$0xff]
        %v1851 = vld [vmem:[#allocation19 + $0x50] sm:$0xff]
        %v1852 = vld [vmem:[#allocation19 + $0x58] sm:$0xff]
        %v1853 = vld [vmem:[#allocation19 + $0x60] sm:$0xff]
        %v1854 = vld [vmem:[#allocation19 + $0x68] sm:$0xff]
        %v1855 = vld [vmem:[#allocation19 + $0x70] sm:$0xff]
        %v1856 = vld [vmem:[#allocation19 + $0x78] sm:$0xff]
        %v1857 = vld [vmem:[#allocation19 + $0x80] sm:$0xff]
        %v1858 = vld [vmem:[#allocation19 + $0x88] sm:$0xff]
        %v1859 = vld [vmem:[#allocation19 + $0x90] sm:$0xff]
        %v1860 = vld [vmem:[#allocation19 + $0x98] sm:$0xff]
        %v1861 = vld [vmem:[#allocation19 + $0xa0] sm:$0xff]
        %v1862 = vld [vmem:[#allocation19 + $0xa8] sm:$0xff]
        %v1863 = vld [vmem:[#allocation19 + $0xb0] sm:$0xff]
        %v1864 = vld [vmem:[#allocation19 + $0xb8] sm:$0xff]
        %v1865 = vld [vmem:[#allocation19 + $0xc0] sm:$0xff]
        %v1866 = vld [vmem:[#allocation19 + $0xc8] sm:$0xff]
        %v1867 = vld [vmem:[#allocation19 + $0xd0] sm:$0xff]
        %v1868 = vld [vmem:[#allocation19 + $0xd8] sm:$0xff]
        %v1869 = vld [vmem:[#allocation19 + $0xe0] sm:$0xff]
        %v1870 = vld [vmem:[#allocation19 + $0xe8] sm:$0xff]
        %v1871 = vld [vmem:[#allocation19 + $0xf0] sm:$0xff]
        %v1872 = vld [vmem:[#allocation19 + $0xf8] sm:$0xff]
        %v1873 = vld [vmem:[%s14] sm:$0x3]
        %v1875 = vperm.slane %v1873, 0
        %v1876 = vperm.slane %v1873, 1
        %1879 = vmatpush.msra.mxu0 %v1871
        %1880 = vmatpush.msra.mxu0 %v1869
        %1881 = vmatpush.msra.mxu0 %v1867
        %1882 = vmatpush.msra.mxu0 %v1865
        %1883 = vmatpush.msra.mxu0 %v1863
        %1884 = vmatpush.msra.mxu0 %v1861
        %1885 = vmatpush.msra.mxu0 %v1859
        %1886 = vmatpush.msra.mxu0 %v1857
        %1887 = vmatpush.msra.mxu0 %v1855
        %1888 = vmatpush.msra.mxu0 %v1853
        %1889 = vmatpush.msra.mxu0 %v1851
        %1890 = vmatpush.msra.mxu0 %v1849
        %1891 = vmatpush.msra.mxu0 %v1847
        %1892 = vmatpush.msra.mxu0 %v1845
        %1893 = vmatpush.msra.mxu0 %v1843
        %1894 = vmatpush.msra.mxu0 %v1841
        %1895 = vmatmul.f32.gmra.mxu0 %v1840
        %v1896 = vpop.f32.mrf.mxu0
        %v1897 = vadd.f32 %v1875, %v1896
        %1898 = vdwg.mxu0
        %1899 = vmatpush.msra.mxu0 %v1872
        %1900 = vmatpush.msra.mxu0 %v1870
        %1901 = vmatpush.msra.mxu0 %v1868
        %1902 = vmatpush.msra.mxu0 %v1866
        %1903 = vmatpush.msra.mxu0 %v1864
        %1904 = vmatpush.msra.mxu0 %v1862
        %1905 = vmatpush.msra.mxu0 %v1860
        %1906 = vmatpush.msra.mxu0 %v1858
        %1907 = vmatpush.msra.mxu0 %v1856
        %1908 = vmatpush.msra.mxu0 %v1854
        %1909 = vmatpush.msra.mxu0 %v1852
        %1910 = vmatpush.msra.mxu0 %v1850
        %1911 = vmatpush.msra.mxu0 %v1848
        %1912 = vmatpush.msra.mxu0 %v1846
        %1913 = vmatpush.msra.mxu0 %v1844
        %1914 = vmatpush.msra.mxu0 %v1842
        %1915 = vmatmul.f32.gmra.mxu0 %v1840
        %v1916 = vpop.f32.mrf.mxu0
        %v1917 = vadd.f32 %v1876, %v1916
        %1918 = vdwg.mxu0
        %v1919 = vmul.f32 %v1897, 0.5
        %v1920 = vmul.f32 %v1917, 0.5
        %v1921 = vmul.f32 %v1897, 0.70710677
        %v1922 = vmul.f32 %v1917, 0.70710677
        %v1923 = vmul.f32 %v1921, %v1921
        %v1924 = vmin.f32 16.0, %v1923
        %v1925 = vmul.f32 %v1924, 2.1237322e-06
        %v1926 = vadd.f32 %v1925, 0.00028619796
        %v1927 = vmul.f32 %v1924, %v1926
        %v1928 = vadd.f32 %v1927, 0.0036580483
        %v1929 = vmul.f32 %v1924, %v1928
        %v1930 = vadd.f32 %v1929, 0.05243302
        %v1931 = vmul.f32 %v1924, %v1930
        %v1932 = vadd.f32 %v1931, 0.18741608
        %v1933 = vmul.f32 %v1924, %v1932
        %v1934 = vadd.f32 %v1933, 1.1283791
        %v1935 = vmul.f32 %v1921, %v1934
        %v1936 = vmul.f32 %v1924, 3.8918573e-05
        %v1937 = vadd.f32 %v1936, 0.001143296
        %v1938 = vmul.f32 %v1924, %v1937
        %v1939 = vadd.f32 %v1938, 0.014752088
        %v1940 = vmul.f32 %v1924, %v1939
        %v1941 = vadd.f32 %v1940, 0.112945676
        %v1942 = vmul.f32 %v1924, %v1941
        %v1943 = vadd.f32 %v1942, 0.4994258
        %v1944 = vmul.f32 %v1924, %v1943
        %v1945 = vadd.f32 %v1944, 1.0
        %v1946 = vrcp.pop %v1945
        %v1947 = vmul.f32 %v1945, %v1946
        %v1948 = vsub.f32 1.0, %v1947
        %v1949 = vmul.f32 %v1946, %v1948
        %v1950 = vadd.f32 %v1946, %v1949
        %vm1951 = vweird.f32 %v1945
        %vm1952 = vweird.f32 %v1946
        %vm1953 = vmor %vm1951, %vm1952
        %v1954 = vsel %vm1953, %v1946, %v1950
        %v1955 = vand.u32 2147483647, %v1945
        %vm1956 = vcmp.eq.f32.partialorder %v1955, 8.507059e+37
        %v1957 = vand.u32 %v1945, 2147483648
        %v1958 = vor.u32 1.1754944e-38, %v1957
        %v1959 = vsel %vm1956, %v1958, %v1954
        %v1960 = vmul.f32 %v1935, %v1959
        %v1961 = vmin.f32 %v1960, 1.0
        %v1962 = vmax.f32 %v1961, -1.0
        %v1963 = vmul.f32 %v1922, %v1922
        %v1964 = vmin.f32 16.0, %v1963
        %v1965 = vmul.f32 %v1964, 2.1237322e-06
        %v1966 = vadd.f32 %v1965, 0.00028619796
        %v1967 = vmul.f32 %v1964, %v1966
        %v1968 = vadd.f32 %v1967, 0.0036580483
        %v1969 = vmul.f32 %v1964, %v1968
        %v1970 = vadd.f32 %v1969, 0.05243302
        %v1971 = vmul.f32 %v1964, %v1970
        %v1972 = vadd.f32 %v1971, 0.18741608
        %v1973 = vmul.f32 %v1964, %v1972
        %v1974 = vadd.f32 %v1973, 1.1283791
        %v1975 = vmul.f32 %v1922, %v1974
        %v1976 = vmul.f32 %v1964, 3.8918573e-05
        %v1977 = vadd.f32 %v1976, 0.001143296
        %v1978 = vmul.f32 %v1964, %v1977
        %v1979 = vadd.f32 %v1978, 0.014752088
        %v1980 = vmul.f32 %v1964, %v1979
        %v1981 = vadd.f32 %v1980, 0.112945676
        %v1982 = vmul.f32 %v1964, %v1981
        %v1983 = vadd.f32 %v1982, 0.4994258
        %v1984 = vmul.f32 %v1964, %v1983
        %v1985 = vadd.f32 %v1984, 1.0
        %v1986 = vrcp.pop %v1985
        %v1987 = vmul.f32 %v1985, %v1986
        %v1988 = vsub.f32 1.0, %v1987
        %v1989 = vmul.f32 %v1986, %v1988
        %v1990 = vadd.f32 %v1986, %v1989
        %vm1991 = vweird.f32 %v1985
        %vm1992 = vweird.f32 %v1986
        %vm1993 = vmor %vm1991, %vm1992
        %v1994 = vsel %vm1993, %v1986, %v1990
        %v1995 = vand.u32 2147483647, %v1985
        %vm1996 = vcmp.eq.f32.partialorder %v1995, 8.507059e+37
        %v1997 = vand.u32 %v1985, 2147483648
        %v1998 = vor.u32 1.1754944e-38, %v1997
        %v1999 = vsel %vm1996, %v1998, %v1994
        %v2000 = vmul.f32 %v1975, %v1999
        %v2001 = vmin.f32 %v2000, 1.0
        %v2002 = vmax.f32 %v2001, -1.0
        %v2003 = vadd.f32 %v1962, 1.0
        %v2004 = vadd.f32 %v2002, 1.0
        %v2005 = vmul.f32 %v1919, %v2003
        %v2006 = vmul.f32 %v1920, %v2004
        %v2007 = vld [vmem:[#allocation20] sm:$0xff]
        %v2008 = vld [vmem:[#allocation20 + $0x8] sm:$0xff]
        %v2009 = vld [vmem:[#allocation20 + $0x10] sm:$0xff]
        %v2010 = vld [vmem:[#allocation20 + $0x18] sm:$0xff]
        %v2011 = vld [vmem:[#allocation20 + $0x20] sm:$0xff]
        %v2012 = vld [vmem:[#allocation20 + $0x28] sm:$0xff]
        %v2013 = vld [vmem:[#allocation20 + $0x30] sm:$0xff]
        %v2014 = vld [vmem:[#allocation20 + $0x38] sm:$0xff]
        %v2015 = vld [vmem:[#allocation20 + $0x40] sm:$0xff]
        %v2016 = vld [vmem:[#allocation20 + $0x48] sm:$0xff]
        %v2017 = vld [vmem:[#allocation20 + $0x50] sm:$0xff]
        %v2018 = vld [vmem:[#allocation20 + $0x58] sm:$0xff]
        %v2019 = vld [vmem:[#allocation20 + $0x60] sm:$0xff]
        %v2020 = vld [vmem:[#allocation20 + $0x68] sm:$0xff]
        %v2021 = vld [vmem:[#allocation20 + $0x70] sm:$0xff]
        %v2022 = vld [vmem:[#allocation20 + $0x78] sm:$0xff]
        %v2023 = vld [vmem:[#allocation20 + $0x80] sm:$0xff]
        %v2024 = vld [vmem:[#allocation20 + $0x88] sm:$0xff]
        %v2025 = vld [vmem:[#allocation20 + $0x90] sm:$0xff]
        %v2026 = vld [vmem:[#allocation20 + $0x98] sm:$0xff]
        %v2027 = vld [vmem:[#allocation20 + $0xa0] sm:$0xff]
        %v2028 = vld [vmem:[#allocation20 + $0xa8] sm:$0xff]
        %v2029 = vld [vmem:[#allocation20 + $0xb0] sm:$0xff]
        %v2030 = vld [vmem:[#allocation20 + $0xb8] sm:$0xff]
        %v2031 = vld [vmem:[#allocation20 + $0xc0] sm:$0xff]
        %v2032 = vld [vmem:[#allocation20 + $0xc8] sm:$0xff]
        %v2033 = vld [vmem:[#allocation20 + $0xd0] sm:$0xff]
        %v2034 = vld [vmem:[#allocation20 + $0xd8] sm:$0xff]
        %v2035 = vld [vmem:[#allocation20 + $0xe0] sm:$0xff]
        %v2036 = vld [vmem:[#allocation20 + $0xe8] sm:$0xff]
        %v2037 = vld [vmem:[#allocation20 + $0xf0] sm:$0xff]
        %v2038 = vld [vmem:[#allocation20 + $0xf8] sm:$0xff]
        %v2039 = vld [vmem:[%s16] sm:$0x1]
        %v2041 = vperm.slane %v2039, 0
        %2043 = vmatpush.msra.mxu0 %v2022
        %2044 = vmatpush.msra.mxu0 %v2021
        %2045 = vmatpush.msra.mxu0 %v2020
        %2046 = vmatpush.msra.mxu0 %v2019
        %2047 = vmatpush.msra.mxu0 %v2018
        %2048 = vmatpush.msra.mxu0 %v2017
        %2049 = vmatpush.msra.mxu0 %v2016
        %2050 = vmatpush.msra.mxu0 %v2015
        %2051 = vmatpush.msra.mxu0 %v2014
        %2052 = vmatpush.msra.mxu0 %v2013
        %2053 = vmatpush.msra.mxu0 %v2012
        %2054 = vmatpush.msra.mxu0 %v2011
        %2055 = vmatpush.msra.mxu0 %v2010
        %2056 = vmatpush.msra.mxu0 %v2009
        %2057 = vmatpush.msra.mxu0 %v2008
        %2058 = vmatpush.msra.mxu0 %v2007
        %2059 = vmatmul.f32.gmra.mxu0 %v2005
        %v2060 = vpop.f32.mrf.mxu0
        %v2061 = vadd.f32 %v2041, %v2060
        %2062 = vdwg.mxu0
        %2063 = vmatpush.msra.mxu0 %v2038
        %2064 = vmatpush.msra.mxu0 %v2037
        %2065 = vmatpush.msra.mxu0 %v2036
        %2066 = vmatpush.msra.mxu0 %v2035
        %2067 = vmatpush.msra.mxu0 %v2034
        %2068 = vmatpush.msra.mxu0 %v2033
        %2069 = vmatpush.msra.mxu0 %v2032
        %2070 = vmatpush.msra.mxu0 %v2031
        %2071 = vmatpush.msra.mxu0 %v2030
        %2072 = vmatpush.msra.mxu0 %v2029
        %2073 = vmatpush.msra.mxu0 %v2028
        %2074 = vmatpush.msra.mxu0 %v2027
        %2075 = vmatpush.msra.mxu0 %v2026
        %2076 = vmatpush.msra.mxu0 %v2025
        %2077 = vmatpush.msra.mxu0 %v2024
        %2078 = vmatpush.msra.mxu0 %v2023
        %2079 = vmatmul.f32.gmra.mxu0 %v2006
        %v2080 = vpop.f32.mrf.mxu0
        %v2081 = vadd.f32 %v2061, %v2080
        %2082 = vdwg.mxu0
        %v2083 = vadd.f32 %v2081, %v1840
        %v2084 = vld [vmem:[%s12 + $0x6] sm:$0x1]
        %v2085 = vld [vmem:[%s12 + $0x7] sm:$0x1]
        %v2086 = vsel %vm917, %v2083, 0.0
        %2087 = vadd.xlane.f32.xlu0 %v2086
        %v2088 = vpop.xlane.xlu0 %2087
        %v2089 = vmul.f32 %v2088, %v927
        %v2090 = vsub.f32 %v2083, %v2089
        %v2091 = vmul.f32 %v2090, %v2090
        %v2092 = vsel %vm917, %v2091, 0.0
        %2093 = vadd.xlane.f32.xlu0 %v2092
        %v2094 = vpop.xlane.xlu0 %2093
        %v2095 = vmul.f32 %v2094, %v927
        %v2096 = vadd.f32 %v2095, 1e-05
        %v2097 = vrsqrt.pop %v2096
        %v2098 = vmul.f32 %v2097, %v2096
        %v2099 = vmul.f32 %v2098, %v2097
        %v2100 = vmul.f32 0.5, %v2099
        %v2101 = vsub.f32 1.5, %v2100
        %v2102 = vmul.f32 %v2097, %v2101
        %vm2103 = vweird.f32 %v2096
        %vm2104 = vweird.f32 %v2097
        %vm2105 = vmor %vm2103, %vm2104
        %v2106 = vsel %vm2105, %v2097, %v2102
        %v2107 = vmul.f32 %v2090, %v2106
        %v2108 = vperm.slane %v2084, 0
        %v2109 = vmul.f32 %v2107, %v2108
        %v2110 = vperm.slane %v2085, 0
        %v2111 = vadd.f32 %v2109, %v2110
        %2112 = vst [vmem:[%s793] sm:$0x3] %v2111
        %2113 = vst [vmem:[%s800] sm:$0x3] %v1810
        %s2114 = sand.u32 %s420, 1
        %s2115 = scalar_lea.sflag [#allocation4], %s2114
        %s2116 = sand.u32 %s420, 1
        %s2117 = smul.addr %s2116, 2
        %s2118 = scalar_lea.vmem [#allocation22], %s2117
        %s2119 = sand.u32 %s446, 1
        %s2120 = scalar_lea.sflag [#allocation24], %s2119
        %s2121 = sand.u32 %s446, 1
        %s2122 = smul.addr %s2121, 2
        %s2123 = scalar_lea.vmem [#allocation23], %s2122
        // Predicated region
        $region137: #{_decoder_steps.1} parent=87 // pred_check
          %p2124 = pneg %p430
        $region138: #{_decoder_steps.1} parent=87 // pred_check_branch
          %2126 = sbr.rel (%p2124) target = $region140
        $region139: #{_decoder_steps.1} parent=87 // pred_region
          %2128 = vsyncadd %s2115, 0
          %s2129 = smul.addr %s45, 2
          %s2130 = scalar_lea.hbm %s17, %s2129
          %s2132 = sshll.u32 %s2118, 4
          %s2133 = int_to_ptr.vmem [resolvable:$true] %s2132
          %s2134 = sshll.u32 %s2130, 4
          %s2135 = int_to_ptr.hbm [resolvable:$true] %s2134
          %2137 = dma.vmem_to_hbm [thread:$0]  %s2133, 32, %s2135, %s2115
        $region140: #{_decoder_steps.1} parent=87 // pred_fallthru
          _
        // Predicated region
        $region141: #{_decoder_steps.1} parent=87 // pred_check
          %p2138 = pneg %p456
        $region142: #{_decoder_steps.1} parent=87 // pred_check_branch
          %2140 = sbr.rel (%p2138) target = $region144
        $region143: #{_decoder_steps.1} parent=87 // pred_region
          %2142 = vsyncadd %s2120, 0
          %s2143 = smul.addr %s45, 2
          %s2144 = scalar_lea.hbm %s18, %s2143
          %s2146 = sshll.u32 %s2123, 4
          %s2147 = int_to_ptr.vmem [resolvable:$true] %s2146
          %s2148 = sshll.u32 %s2144, 4
          %s2149 = int_to_ptr.hbm [resolvable:$true] %s2148
          %2151 = dma.vmem_to_hbm [thread:$0]  %s2147, 32, %s2149, %s2120
        $region144: #{_decoder_steps.1} parent=87 // pred_fallthru
          _
      $region88: #{_decoder_steps.1} parent=5 // pred_fallthru
        _
      %p2152 = scmp.le.s32.totalorder 2, %s40
      // Predicated region
      $region145: #{_decoder_steps.1} parent=5 // pred_check
        %p2153 = pneg %p2152
      $region146: #{_decoder_steps.1} parent=5 // pred_check_branch
        %2155 = sbr.rel (%p2153) target = $region148
      $region147: #{_decoder_steps.1} parent=5 // pred_region
        %s2156 = ssub.s32 %s40, 2
        // Predicated region
        $region149: #{_decoder_steps.1} parent=147 // pred_check
          %p2157 = pneg %p436
        $region150: #{_decoder_steps.1} parent=147 // pred_check_branch
          %2159 = sbr.rel (%p2157) target = $region152
        $region151: #{_decoder_steps.1} parent=147 // pred_region
          %s2160 = sand.u32 %s421, 1
          %s2161 = scalar_lea.sflag [#allocation4], %s2160
          %s2162 = sand.u32 %s421, 1
          %s2163 = smul.addr %s2162, 2
          %s2164 = scalar_lea.vmem [#allocation22], %s2163
          %2166 = dma.done %s2161, 32
        $region152: #{_decoder_steps.1} parent=147 // pred_fallthru
          _
        // Predicated region
        $region153: #{_decoder_steps.1} parent=147 // pred_check
          %p2167 = pneg %p462
        $region154: #{_decoder_steps.1} parent=147 // pred_check_branch
          %2169 = sbr.rel (%p2167) target = $region156
        $region155: #{_decoder_steps.1} parent=147 // pred_region
          %s2170 = sand.u32 %s447, 1
          %s2171 = scalar_lea.sflag [#allocation24], %s2170
          %s2172 = sand.u32 %s447, 1
          %s2173 = smul.addr %s2172, 2
          %s2174 = scalar_lea.vmem [#allocation23], %s2173
          %2176 = dma.done %s2171, 32
        $region156: #{_decoder_steps.1} parent=147 // pred_fallthru
          _
      $region148: #{_decoder_steps.1} parent=5 // pred_fallthru
        _
    $region6: #{_decoder_steps.1} parent=1 // loop_footer
      %s44 = sadd.s32 1, %s40
    $region7: #{_decoder_steps.1} parent=1 // loop_footer_branch
      %39 = sbr.rel target = $region3
    $region8: #{_decoder_steps.1} parent=1 // loop_exit
      _
    %2177 = vsyncpa [#allocation3], 1
    %s2178 = scalar_lea.sflag [#allocation3], 1
    %2179 = vsyncpa %s2178, 1
    %2180 = vsyncpa [#allocation6], 1
    %2181 = vsyncpa [#allocation9], 1
    %2182 = vsyncpa [#allocation12], 1
    %2183 = vsyncpa [#allocation15], 1
    %2184 = vsyncpa [#allocation18], 1
    %2185 = vsyncpa [#allocation21], 1
    %2186 = vsyncpa [#allocation4], 1
    %s2187 = scalar_lea.sflag [#allocation4], 1
    %2188 = vsyncpa %s2187, 1
    %2189 = vsyncpa [#allocation24], 1
    %s2190 = scalar_lea.sflag [#allocation24], 1
    %2191 = vsyncpa %s2190, 1

</llo_original>
